<compile_context>
chip_gen: v5e
topology: v5e:2x2
jax: 0.10.0
libtpu: 0.0.40
codegen_flags: <defaults>
</compile_context>

<pallas_src>
import numpy as np

import jax
import jax.numpy as jnp
from jax.experimental import pallas as pl
from jax.experimental.pallas import tpu as pltpu

_MB = 1024 * 1024


def _vmem_limit(est_bytes):
    return int(min(96 * _MB, max(8 * _MB, 4 * est_bytes)))


def _largest_divisor_leq(n, cap, multiple_of=1):
    """Largest divisor of n that is <= cap and a multiple of `multiple_of` (0 if none)."""
    best = 0
    i = 1
    while i * i <= n:
        if n % i == 0:
            for cand in (i, n // i):
                if cand <= cap and cand % multiple_of == 0 and cand > best:
                    best = cand
        i += 1
    return best


# ----------------------------------------------------------------------------
# Kernel A: 1x1 conv (as matmul, BN scale folded into weights) + bias + ReLU
# ----------------------------------------------------------------------------
def _conv_bn_relu_kernel(x_ref, w_ref, b_ref, o_ref):
    # x_ref: (1, C_in, TP)   pixels on the lane axis
    # w_ref: (C_out, C_in)   BN scale already folded in
    # b_ref: (C_out, 1)      folded BN bias
    # o_ref: (1, C_out, TP)
    y = jnp.dot(w_ref[...], x_ref[0], preferred_element_type=jnp.float32)
    o_ref[0] = jnp.maximum(y + b_ref[...], 0.0).astype(o_ref.dtype)


def conv_bn_relu(x3, w_folded, bias):
    """x3: (N, C_in, H*W) -> (N, C_out, H*W).  Conv1x1 + BN(eval, folded) + ReLU."""
    N, c_in, HW = x3.shape
    c_out = w_folded.shape[0]

    # Pixel tile from a ~2MB/operand VMEM budget; must divide HW exactly and be a
    # multiple of 128 when we actually tile (otherwise take the full axis).
    cap = max(128, (2 * _MB) // (4 * (c_in + c_out)))
    if HW <= cap:
        tp = HW
    else:
        tp = _largest_divisor_leq(HW, cap, multiple_of=128)
        if tp == 0:
            tp = HW
    grid = (N, HW // tp)

    flops = 2 * N * HW * c_in * c_out
    bytes_accessed = 4 * (N * HW * (c_in + c_out) + c_in * c_out + c_out)
    vmem_est = 4 * (2 * tp * (c_in + c_out) + c_in * c_out + c_out)

    return pl.pallas_call(
        _conv_bn_relu_kernel,
        out_shape=jax.ShapeDtypeStruct((N, c_out, HW), jnp.float32),
        grid_spec=pltpu.PrefetchScalarGridSpec(
            num_scalar_prefetch=0,
            grid=grid,
            in_specs=[
                pl.BlockSpec((1, c_in, tp), lambda n, p: (n, 0, p)),
                pl.BlockSpec((c_out, c_in), lambda n, p: (0, 0)),
                pl.BlockSpec((c_out, 1), lambda n, p: (0, 0)),
            ],
            out_specs=pl.BlockSpec((1, c_out, tp), lambda n, p: (n, 0, p)),
        ),
        compiler_params=pltpu.CompilerParams(
            dimension_semantics=("parallel", "parallel"),
            vmem_limit_bytes=_vmem_limit(vmem_est),
        ),
        cost_estimate=pl.CostEstimate(
            flops=flops, transcendentals=0, bytes_accessed=bytes_accessed),
    )(x3, w_folded, bias)


# ----------------------------------------------------------------------------
# Kernel B: 2x bilinear upsample (align_corners=True), batched over channels
#   out = A_h @ img @ A_w^T, for a block of BC channel images per grid step
# ----------------------------------------------------------------------------
def _upsample2x_kernel(x_ref, ah_ref, awt_ref, o_ref):
    # x_ref:   (BC, H, W)
    # ah_ref:  (H2, H)    height interpolation matrix A_h
    # awt_ref: (W, W2)    transposed width interpolation matrix A_w^T
    # o_ref:   (BC, H2, W2)
    bc, h, w = x_ref.shape
    h2 = ah_ref.shape[0]
    w2 = awt_ref.shape[1]
    x = x_ref[...]
    # Width interpolation: collapse (BC, H) rows -> one clean 2D MXU matmul.
    t = jnp.dot(x.reshape(bc * h, w), awt_ref[...],
                preferred_element_type=jnp.float32)          # (BC*H, W2)
    t = t.reshape(bc, h, w2)                                  # (BC, H, W2)
    # Height interpolation: batched matmul over the channel block.
    ah_b = jnp.broadcast_to(ah_ref[...][None, :, :], (bc, h2, h))
    z = jnp.einsum('bij,bjk->bik', ah_b, t,
                   preferred_element_type=jnp.float32)        # (BC, H2, W2)
    o_ref[...] = z.astype(o_ref.dtype)


def bilinear_upsample2x(x_imgs, a_h, a_wt):
    """x_imgs: (NC, H, W) -> (NC, 2H, 2W), bilinear align_corners=True."""
    NC, H, W = x_imgs.shape
    H2, W2 = a_h.shape[0], a_wt.shape[1]

    # Channel-image block: fits a ~4MB VMEM budget, always divides NC exactly,
    # and keeps at least 2 grid steps when possible (megacore).
    per_ch = 4 * (2 * (H * W + H2 * W2) + H * W2 + H2 * H)
    cap = max(1, (4 * _MB) // per_ch)
    upper = min(cap, max(1, NC // 2)) if NC > 1 else 1
    bc = _largest_divisor_leq(NC, upper) or 1
    grid = (NC // bc,)

    flops = 2 * NC * (H * W * W2 + H2 * H * W2)
    bytes_accessed = 4 * (NC * (H * W + H2 * W2) + H2 * H + W * W2)
    vmem_est = 4 * (2 * bc * (H * W + H2 * W2) + bc * (H * W2 + H2 * H)
                    + H2 * H + W * W2)

    return pl.pallas_call(
        _upsample2x_kernel,
        out_shape=jax.ShapeDtypeStruct((NC, H2, W2), jnp.float32),
        grid_spec=pltpu.PrefetchScalarGridSpec(
            num_scalar_prefetch=0,
            grid=grid,
            in_specs=[
                pl.BlockSpec((bc, H, W), lambda b: (b, 0, 0)),
                pl.BlockSpec((H2, H), lambda b: (0, 0)),
                pl.BlockSpec((W, W2), lambda b: (0, 0)),
            ],
            out_specs=pl.BlockSpec((bc, H2, W2), lambda b: (b, 0, 0)),
        ),
        compiler_params=pltpu.CompilerParams(
            dimension_semantics=("parallel",),
            vmem_limit_bytes=_vmem_limit(vmem_est),
        ),
        cost_estimate=pl.CostEstimate(
            flops=flops, transcendentals=0, bytes_accessed=bytes_accessed),
    )(x_imgs, a_h, a_wt)


# ----------------------------------------------------------------------------
# Glue: trace-time interpolation matrices, BN folding, per-stage wiring
# ----------------------------------------------------------------------------
_INTERP_CACHE = {}


def bilinear_matrix_align_corners(in_size, out_size):
    """(out_size, in_size) numpy interpolation matrix, align_corners=True."""
    key = (in_size, out_size)
    if key in _INTERP_CACHE:
        return _INTERP_CACHE[key]
    A = np.zeros((out_size, in_size), np.float32)
    if in_size == 1:
        A[:, 0] = 1.0
    else:
        src = np.arange(out_size, dtype=np.float64) * (in_size - 1) / (out_size - 1)
        lo = np.clip(np.floor(src).astype(np.int64), 0, in_size - 2)
        frac = (src - lo).astype(np.float32)
        rows = np.arange(out_size)
        A[rows, lo] += 1.0 - frac
        A[rows, lo + 1] += frac
    _INTERP_CACHE[key] = A
    return A


def fold_bn_into_conv(w, gamma, beta, running_mean, running_var, eps=1e-5):
    """Fold eval-mode BN into the 1x1 conv weights: y = (scale*W)x + bias."""
    scale = gamma / jnp.sqrt(running_var + eps)
    bias = beta - running_mean * scale
    w_folded = w * scale[:, None]
    return w_folded, bias.reshape(-1, 1)


def make_up_params(key, in_channels, up_factor=2, channel_red=True):
    """Deterministic synthetic parameters matching the PyTorch module shapes."""
    assert up_factor in (2, 4, 8)
    c_out_first = in_channels // 2 if channel_red else in_channels
    chan_pairs = [(in_channels, c_out_first)]
    if up_factor in (4, 8):
        chan_pairs.append((in_channels // 2, in_channels // 4))
    if up_factor == 8:
        chan_pairs.append((in_channels // 4, in_channels // 8))

    stages = []
    for (ci, co) in chan_pairs:
        key, k_w, k_g, k_b, k_m, k_v = jax.random.split(key, 6)
        w = jax.random.normal(k_w, (co, ci), jnp.float32) * 0.1   # (C_out,C_in,1,1) squeezed
        gamma = 1.0 + 0.1 * jax.random.normal(k_g, (co,), jnp.float32)
        beta = 0.1 * jax.random.normal(k_b, (co,), jnp.float32)
        rmean = 0.1 * jax.random.normal(k_m, (co,), jnp.float32)
        rvar = jnp.abs(jax.random.normal(k_v, (co,), jnp.float32)) + 0.5
        stages.append({"w": w, "gamma": gamma, "beta": beta,
                       "mean": rmean, "var": rvar})
    return stages


def up_stage(x, stage):
    """One stage: ReLU(BN(Conv1x1(x))) then 2x bilinear upsample. NCHW in/out."""
    N, c_in, H, W = x.shape
    w_folded, bias = fold_bn_into_conv(stage["w"], stage["gamma"], stage["beta"],
                                       stage["mean"], stage["var"])
    c_out = w_folded.shape[0]
    x3 = x.reshape(N, c_in, H * W)                            # free (row-major)
    y3 = conv_bn_relu(x3, w_folded, bias)                     # (N, C_out, H*W)
    y_imgs = y3.reshape(N * c_out, H, W)                      # free (row-major)
    a_h = jnp.asarray(bilinear_matrix_align_corners(H, 2 * H))
    a_wt = jnp.asarray(bilinear_matrix_align_corners(W, 2 * W).T)
    z = bilinear_upsample2x(y_imgs, a_h, a_wt)                # (N*C_out, 2H, 2W)
    return z.reshape(N, c_out, 2 * H, 2 * W)                  # free (row-major)


@jax.jit
def up_forward(x_nchw, stages):
    x = x_nchw
    for stage in stages:
        x = up_stage(x, stage)
    return x


def _reference_forward(x, stages, eps=1e-5):
    """Plain-XLA reference (un-folded BN, same math) for a sanity check."""
    ref = x
    for st in stages:
        _, _, H, W = ref.shape
        y = jnp.einsum('oc,nchw->nohw', st["w"], ref)
        y = (y - st["mean"][None, :, None, None]) * jax.lax.rsqrt(
            st["var"][None, :, None, None] + eps)
        y = y * st["gamma"][None, :, None, None] + st["beta"][None, :, None, None]
        y = jnp.maximum(y, 0.0)
        a_h = jnp.asarray(bilinear_matrix_align_corners(H, 2 * H))
        a_w = jnp.asarray(bilinear_matrix_align_corners(W, 2 * W))
        ref = jnp.einsum('hH,ncHW,wW->nchw', a_h, y, a_w)
    return ref


if __name__ == "__main__":
    key = jax.random.PRNGKey(0)
    k_x, k_p = jax.random.split(key)

    in_channels = 16
    up_factor = 4          # exercises two conv/bn/relu + upsample stages
    N, H, W = 2, 16, 16

    x = jax.random.normal(k_x, (N, in_channels, H, W), jnp.float32)
    stages = make_up_params(k_p, in_channels, up_factor=up_factor, channel_red=True)

    out = jax.block_until_ready(up_forward(x, stages))

    expected_shape = (N, in_channels // 4, H * up_factor, W * up_factor)
    assert out.shape == expected_shape, (out.shape, expected_shape)
    assert bool(jnp.all(jnp.isfinite(out)))

    ref = _reference_forward(x, stages)
    assert bool(jnp.allclose(out, ref, rtol=2e-2, atol=2e-2)), float(
        jnp.max(jnp.abs(out - ref)))

    print("KERNEL_OK")
</pallas_src>

<mosaic_0001>
module attributes {stable_mosaic.version = 11 : i64} {
  func.func @_upsample2x_kernel(%arg0: i32, %arg1: memref<8x16x16xf32, #tpu.memory_space<vmem>>, %arg2: memref<32x16xf32, #tpu.memory_space<vmem>>, %arg3: memref<16x32xf32, #tpu.memory_space<vmem>>, %arg4: memref<8x32x32xf32, #tpu.memory_space<vmem>>) attributes {dimension_semantics = [#tpu.dimension_semantics<parallel>], iteration_bounds = array<i64: 2>, scalar_prefetch = 0 : i64, scratch_operands = 0 : i64, tpu.core_type = #tpu.core_type<tc>, window_params = [{transform_indices = @transform_0, window_bounds = array<i64: 8, 16, 16>}, {pipeline_mode = #tpu.pipeline_mode<synchronous>, transform_indices = @transform_1, window_bounds = array<i64: 32, 16>}, {pipeline_mode = #tpu.pipeline_mode<synchronous>, transform_indices = @transform_2, window_bounds = array<i64: 16, 32>}, {transform_indices = @transform_3, window_bounds = array<i64: 8, 32, 32>}]} {
    %c0 = arith.constant 0 : index
    %c0_0 = arith.constant 0 : index
    %c0_1 = arith.constant 0 : index
    %0 = vector.load %arg1[%c0, %c0_0, %c0_1] : memref<8x16x16xf32, #tpu.memory_space<vmem>>, vector<8x16x16xf32>
    %1 = vector.shape_cast %0 : vector<8x16x16xf32> to vector<128x16xf32>
    %c0_2 = arith.constant 0 : index
    %c0_3 = arith.constant 0 : index
    %2 = vector.load %arg3[%c0_2, %c0_3] : memref<16x32xf32, #tpu.memory_space<vmem>>, vector<16x32xf32>
    %cst = arith.constant dense<0.000000e+00> : vector<128x32xf32>
    %3 = tpu.matmul %1, %2, %cst {dimension_numbers = #tpu.dot_dimension_numbers<[1], [0], [0], [1], [0, 0, 1, 1], [], []>} : vector<128x16xf32>, vector<16x32xf32>, vector<128x32xf32> -> vector<128x32xf32>
    %4 = vector.shape_cast %3 : vector<128x32xf32> to vector<8x16x32xf32>
    %c0_4 = arith.constant 0 : index
    %c0_5 = arith.constant 0 : index
    %5 = vector.load %arg2[%c0_4, %c0_5] : memref<32x16xf32, #tpu.memory_space<vmem>>, vector<32x16xf32>
    %6 = vector.shape_cast %5 : vector<32x16xf32> to vector<1x32x16xf32>
    %7 = vector.shape_cast %6 : vector<1x32x16xf32> to vector<1x32x16xf32>
    %8 = vector.broadcast %7 : vector<1x32x16xf32> to vector<8x32x16xf32>
    "tpu.trace_start"() <{level = 10 : i32, message = "bij,bjk->bik"}> : () -> ()
    %cst_6 = arith.constant dense<0.000000e+00> : vector<8x32x32xf32>
    %9 = tpu.matmul %8, %4, %cst_6 {dimension_numbers = #tpu.dot_dimension_numbers<[2], [1], [1], [2], [0, 0, 0, 1, 1, 2], [0], [0]>} : vector<8x32x16xf32>, vector<8x16x32xf32>, vector<8x32x32xf32> -> vector<8x32x32xf32>
    "tpu.trace_stop"() : () -> ()
    %c0_7 = arith.constant 0 : index
    %c0_8 = arith.constant 0 : index
    %c0_9 = arith.constant 0 : index
    %10 = vector.load %arg4[%c0_7, %c0_8, %c0_9] : memref<8x32x32xf32, #tpu.memory_space<vmem>>, vector<8x32x32xf32>
    tpu.vector_store %arg4[%c0_7, %c0_8, %c0_9], %9 {strides = array<i32>} : memref<8x32x32xf32, #tpu.memory_space<vmem>>, vector<8x32x32xf32>,
    return
  }
  func.func @transform_0(%arg0: i32) -> (i32, i32, i32) {
    %c0_i32 = arith.constant 0 : i32
    %c0_i32_0 = arith.constant 0 : i32
    %c0_i32_1 = arith.constant 0 : i32
    return %arg0, %c0_i32, %c0_i32_0 : i32, i32, i32
  }
  func.func @transform_1(%arg0: i32) -> (i32, i32) {
    %c0_i32 = arith.constant 0 : i32
    %c0_i32_0 = arith.constant 0 : i32
    %c0_i32_1 = arith.constant 0 : i32
    return %c0_i32, %c0_i32_0 : i32, i32
  }
  func.func @transform_2(%arg0: i32) -> (i32, i32) {
    %c0_i32 = arith.constant 0 : i32
    %c0_i32_0 = arith.constant 0 : i32
    %c0_i32_1 = arith.constant 0 : i32
    return %c0_i32, %c0_i32_0 : i32, i32
  }
  func.func @transform_3(%arg0: i32) -> (i32, i32, i32) {
    %c0_i32 = arith.constant 0 : i32
    %c0_i32_0 = arith.constant 0 : i32
    %c0_i32_1 = arith.constant 0 : i32
    return %arg0, %c0_i32, %c0_i32_0 : i32, i32, i32
  }
}

module attributes {stable_mosaic.version = 11 : i64} {
  func.func @_conv_bn_relu_kernel(%arg0: i32, %arg1: i32, %arg2: memref<1x16x256xf32, #tpu.memory_space<vmem>>, %arg3: memref<8x16xf32, #tpu.memory_space<vmem>>, %arg4: memref<8x1xf32, #tpu.memory_space<vmem>>, %arg5: memref<1x8x256xf32, #tpu.memory_space<vmem>>) attributes {dimension_semantics = [#tpu.dimension_semantics<parallel>, #tpu.dimension_semantics<parallel>], iteration_bounds = array<i64: 2, 1>, scalar_prefetch = 0 : i64, scratch_operands = 0 : i64, tpu.core_type = #tpu.core_type<tc>, window_params = [{transform_indices = @transform_0, window_bounds = array<i64: 1, 16, 256>}, {pipeline_mode = #tpu.pipeline_mode<synchronous>, transform_indices = @transform_1, window_bounds = array<i64: 8, 16>}, {pipeline_mode = #tpu.pipeline_mode<synchronous>, transform_indices = @transform_2, window_bounds = array<i64: 8, 1>}, {transform_indices = @transform_3, window_bounds = array<i64: 1, 8, 256>}]} {
    %c0 = arith.constant 0 : index
    %c0_0 = arith.constant 0 : index
    %0 = vector.load %arg3[%c0, %c0_0] : memref<8x16xf32, #tpu.memory_space<vmem>>, vector<8x16xf32>
    %c0_1 = arith.constant 0 : index
    %c0_2 = arith.constant 0 : index
    %c0_3 = arith.constant 0 : index
    %1 = vector.load %arg2[%c0_1, %c0_2, %c0_3] : memref<1x16x256xf32, #tpu.memory_space<vmem>>, vector<1x16x256xf32>
    %2 = vector.shape_cast %1 : vector<1x16x256xf32> to vector<16x256xf32>
    %cst = arith.constant dense<0.000000e+00> : vector<8x256xf32>
    %3 = tpu.matmul %0, %2, %cst {dimension_numbers = #tpu.dot_dimension_numbers<[1], [0], [0], [1], [0, 0, 1, 1], [], []>} : vector<8x16xf32>, vector<16x256xf32>, vector<8x256xf32> -> vector<8x256xf32>
    %c0_4 = arith.constant 0 : index
    %c0_5 = arith.constant 0 : index
    %4 = vector.load %arg4[%c0_4, %c0_5] : memref<8x1xf32, #tpu.memory_space<vmem>>, vector<8x1xf32>
    %5 = vector.broadcast %4 : vector<8x1xf32> to vector<8x256xf32>
    %6 = arith.addf %3, %5 : vector<8x256xf32>
    %cst_6 = arith.constant 0.000000e+00 : f32
    %7 = vector.broadcast %cst_6 : f32 to vector<8x256xf32>
    %8 = arith.maximumf %6, %7 : vector<8x256xf32>
    %c0_7 = arith.constant 0 : index
    %c0_8 = arith.constant 0 : index
    %c0_9 = arith.constant 0 : index
    %9 = vector.load %arg5[%c0_7, %c0_8, %c0_9] : memref<1x8x256xf32, #tpu.memory_space<vmem>>, vector<1x8x256xf32>
    %10 = vector.shape_cast %9 : vector<1x8x256xf32> to vector<8x256xf32>
    %11 = vector.shape_cast %8 : vector<8x256xf32> to vector<1x8x256xf32>
    tpu.vector_store %arg5[%c0_7, %c0_8, %c0_9], %11 {strides = array<i32>} : memref<1x8x256xf32, #tpu.memory_space<vmem>>, vector<1x8x256xf32>,
    return
  }
  func.func @transform_0(%arg0: i32, %arg1: i32) -> (i32, i32, i32) {
    %c0_i32 = arith.constant 0 : i32
    %c0_i32_0 = arith.constant 0 : i32
    return %arg0, %c0_i32, %arg1 : i32, i32, i32
  }
  func.func @transform_1(%arg0: i32, %arg1: i32) -> (i32, i32) {
    %c0_i32 = arith.constant 0 : i32
    %c0_i32_0 = arith.constant 0 : i32
    %c0_i32_1 = arith.constant 0 : i32
    return %c0_i32, %c0_i32_0 : i32, i32
  }
  func.func @transform_2(%arg0: i32, %arg1: i32) -> (i32, i32) {
    %c0_i32 = arith.constant 0 : i32
    %c0_i32_0 = arith.constant 0 : i32
    %c0_i32_1 = arith.constant 0 : i32
    return %c0_i32, %c0_i32_0 : i32, i32
  }
  func.func @transform_3(%arg0: i32, %arg1: i32) -> (i32, i32, i32) {
    %c0_i32 = arith.constant 0 : i32
    %c0_i32_0 = arith.constant 0 : i32
    return %arg0, %c0_i32, %arg1 : i32, i32, i32
  }
}

module attributes {stable_mosaic.version = 11 : i64} {
  func.func @_conv_bn_relu_kernel(%arg0: i32, %arg1: i32, %arg2: memref<1x8x1024xf32, #tpu.memory_space<vmem>>, %arg3: memref<4x8xf32, #tpu.memory_space<vmem>>, %arg4: memref<4x1xf32, #tpu.memory_space<vmem>>, %arg5: memref<1x4x1024xf32, #tpu.memory_space<vmem>>) attributes {dimension_semantics = [#tpu.dimension_semantics<parallel>, #tpu.dimension_semantics<parallel>], iteration_bounds = array<i64: 2, 1>, scalar_prefetch = 0 : i64, scratch_operands = 0 : i64, tpu.core_type = #tpu.core_type<tc>, window_params = [{transform_indices = @transform_0, window_bounds = array<i64: 1, 8, 1024>}, {pipeline_mode = #tpu.pipeline_mode<synchronous>, transform_indices = @transform_1, window_bounds = array<i64: 4, 8>}, {pipeline_mode = #tpu.pipeline_mode<synchronous>, transform_indices = @transform_2, window_bounds = array<i64: 4, 1>}, {transform_indices = @transform_3, window_bounds = array<i64: 1, 4, 1024>}]} {
    %c0 = arith.constant 0 : index
    %c0_0 = arith.constant 0 : index
    %0 = vector.load %arg3[%c0, %c0_0] : memref<4x8xf32, #tpu.memory_space<vmem>>, vector<4x8xf32>
    %c0_1 = arith.constant 0 : index
    %c0_2 = arith.constant 0 : index
    %c0_3 = arith.constant 0 : index
    %1 = vector.load %arg2[%c0_1, %c0_2, %c0_3] : memref<1x8x1024xf32, #tpu.memory_space<vmem>>, vector<1x8x1024xf32>
    %2 = vector.shape_cast %1 : vector<1x8x1024xf32> to vector<8x1024xf32>
    %cst = arith.constant dense<0.000000e+00> : vector<4x1024xf32>
    %3 = tpu.matmul %0, %2, %cst {dimension_numbers = #tpu.dot_dimension_numbers<[1], [0], [0], [1], [0, 0, 1, 1], [], []>} : vector<4x8xf32>, vector<8x1024xf32>, vector<4x1024xf32> -> vector<4x1024xf32>
    %c0_4 = arith.constant 0 : index
    %c0_5 = arith.constant 0 : index
    %4 = vector.load %arg4[%c0_4, %c0_5] : memref<4x1xf32, #tpu.memory_space<vmem>>, vector<4x1xf32>
    %5 = vector.broadcast %4 : vector<4x1xf32> to vector<4x1024xf32>
    %6 = arith.addf %3, %5 : vector<4x1024xf32>
    %cst_6 = arith.constant 0.000000e+00 : f32
    %7 = vector.broadcast %cst_6 : f32 to vector<4x1024xf32>
    %8 = arith.maximumf %6, %7 : vector<4x1024xf32>
    %c0_7 = arith.constant 0 : index
    %c0_8 = arith.constant 0 : index
    %c0_9 = arith.constant 0 : index
    %9 = vector.load %arg5[%c0_7, %c0_8, %c0_9] : memref<1x4x1024xf32, #tpu.memory_space<vmem>>, vector<1x4x1024xf32>
    %10 = vector.shape_cast %9 : vector<1x4x1024xf32> to vector<4x1024xf32>
    %11 = vector.shape_cast %8 : vector<4x1024xf32> to vector<1x4x1024xf32>
    tpu.vector_store %arg5[%c0_7, %c0_8, %c0_9], %11 {strides = array<i32>} : memref<1x4x1024xf32, #tpu.memory_space<vmem>>, vector<1x4x1024xf32>,
    return
  }
  func.func @transform_0(%arg0: i32, %arg1: i32) -> (i32, i32, i32) {
    %c0_i32 = arith.constant 0 : i32
    %c0_i32_0 = arith.constant 0 : i32
    return %arg0, %c0_i32, %arg1 : i32, i32, i32
  }
  func.func @transform_1(%arg0: i32, %arg1: i32) -> (i32, i32) {
    %c0_i32 = arith.constant 0 : i32
    %c0_i32_0 = arith.constant 0 : i32
    %c0_i32_1 = arith.constant 0 : i32
    return %c0_i32, %c0_i32_0 : i32, i32
  }
  func.func @transform_2(%arg0: i32, %arg1: i32) -> (i32, i32) {
    %c0_i32 = arith.constant 0 : i32
    %c0_i32_0 = arith.constant 0 : i32
    %c0_i32_1 = arith.constant 0 : i32
    return %c0_i32, %c0_i32_0 : i32, i32
  }
  func.func @transform_3(%arg0: i32, %arg1: i32) -> (i32, i32, i32) {
    %c0_i32 = arith.constant 0 : i32
    %c0_i32_0 = arith.constant 0 : i32
    return %arg0, %c0_i32, %arg1 : i32, i32, i32
  }
}

module attributes {stable_mosaic.version = 11 : i64} {
  func.func @_upsample2x_kernel(%arg0: i32, %arg1: memref<4x32x32xf32, #tpu.memory_space<vmem>>, %arg2: memref<64x32xf32, #tpu.memory_space<vmem>>, %arg3: memref<32x64xf32, #tpu.memory_space<vmem>>, %arg4: memref<4x64x64xf32, #tpu.memory_space<vmem>>) attributes {dimension_semantics = [#tpu.dimension_semantics<parallel>], iteration_bounds = array<i64: 2>, scalar_prefetch = 0 : i64, scratch_operands = 0 : i64, tpu.core_type = #tpu.core_type<tc>, window_params = [{transform_indices = @transform_0, window_bounds = array<i64: 4, 32, 32>}, {pipeline_mode = #tpu.pipeline_mode<synchronous>, transform_indices = @transform_1, window_bounds = array<i64: 64, 32>}, {pipeline_mode = #tpu.pipeline_mode<synchronous>, transform_indices = @transform_2, window_bounds = array<i64: 32, 64>}, {transform_indices = @transform_3, window_bounds = array<i64: 4, 64, 64>}]} {
    %c0 = arith.constant 0 : index
    %c0_0 = arith.constant 0 : index
    %c0_1 = arith.constant 0 : index
    %0 = vector.load %arg1[%c0, %c0_0, %c0_1] : memref<4x32x32xf32, #tpu.memory_space<vmem>>, vector<4x32x32xf32>
    %1 = vector.shape_cast %0 : vector<4x32x32xf32> to vector<128x32xf32>
    %c0_2 = arith.constant 0 : index
    %c0_3 = arith.constant 0 : index
    %2 = vector.load %arg3[%c0_2, %c0_3] : memref<32x64xf32, #tpu.memory_space<vmem>>, vector<32x64xf32>
    %cst = arith.constant dense<0.000000e+00> : vector<128x64xf32>
    %3 = tpu.matmul %1, %2, %cst {dimension_numbers = #tpu.dot_dimension_numbers<[1], [0], [0], [1], [0, 0, 1, 1], [], []>} : vector<128x32xf32>, vector<32x64xf32>, vector<128x64xf32> -> vector<128x64xf32>
    %4 = vector.shape_cast %3 : vector<128x64xf32> to vector<4x32x64xf32>
    %c0_4 = arith.constant 0 : index
    %c0_5 = arith.constant 0 : index
    %5 = vector.load %arg2[%c0_4, %c0_5] : memref<64x32xf32, #tpu.memory_space<vmem>>, vector<64x32xf32>
    %6 = vector.shape_cast %5 : vector<64x32xf32> to vector<1x64x32xf32>
    %7 = vector.shape_cast %6 : vector<1x64x32xf32> to vector<1x64x32xf32>
    %8 = vector.broadcast %7 : vector<1x64x32xf32> to vector<4x64x32xf32>
    "tpu.trace_start"() <{level = 10 : i32, message = "bij,bjk->bik"}> : () -> ()
    %cst_6 = arith.constant dense<0.000000e+00> : vector<4x64x64xf32>
    %9 = tpu.matmul %8, %4, %cst_6 {dimension_numbers = #tpu.dot_dimension_numbers<[2], [1], [1], [2], [0, 0, 0, 1, 1, 2], [0], [0]>} : vector<4x64x32xf32>, vector<4x32x64xf32>, vector<4x64x64xf32> -> vector<4x64x64xf32>
    "tpu.trace_stop"() : () -> ()
    %c0_7 = arith.constant 0 : index
    %c0_8 = arith.constant 0 : index
    %c0_9 = arith.constant 0 : index
    %10 = vector.load %arg4[%c0_7, %c0_8, %c0_9] : memref<4x64x64xf32, #tpu.memory_space<vmem>>, vector<4x64x64xf32>
    tpu.vector_store %arg4[%c0_7, %c0_8, %c0_9], %9 {strides = array<i32>} : memref<4x64x64xf32, #tpu.memory_space<vmem>>, vector<4x64x64xf32>,
    return
  }
  func.func @transform_0(%arg0: i32) -> (i32, i32, i32) {
    %c0_i32 = arith.constant 0 : i32
    %c0_i32_0 = arith.constant 0 : i32
    %c0_i32_1 = arith.constant 0 : i32
    return %arg0, %c0_i32, %c0_i32_0 : i32, i32, i32
  }
  func.func @transform_1(%arg0: i32) -> (i32, i32) {
    %c0_i32 = arith.constant 0 : i32
    %c0_i32_0 = arith.constant 0 : i32
    %c0_i32_1 = arith.constant 0 : i32
    return %c0_i32, %c0_i32_0 : i32, i32
  }
  func.func @transform_2(%arg0: i32) -> (i32, i32) {
    %c0_i32 = arith.constant 0 : i32
    %c0_i32_0 = arith.constant 0 : i32
    %c0_i32_1 = arith.constant 0 : i32
    return %c0_i32, %c0_i32_0 : i32, i32
  }
  func.func @transform_3(%arg0: i32) -> (i32, i32, i32) {
    %c0_i32 = arith.constant 0 : i32
    %c0_i32_0 = arith.constant 0 : i32
    %c0_i32_1 = arith.constant 0 : i32
    return %arg0, %c0_i32, %c0_i32_0 : i32, i32, i32
  }
}

</mosaic_0001>

<llo_original>
// kernel: up_forward.6
$region0: #{up_forward.6}
  #allocation0 [shape = 'u32[]', space=smem, size = 0x4, offset = 0x4, fixed_abs, tag = 'smem constant byte address 0x4 - core index']
  #allocation1 [shape = 'u32[72,128]{1,0:T(1,128)}', space=vmem, size = 0x9000, scoped, tag = 'internal scratch']
  %s0 = inlined_call_operand.vmem [shape: f32[2,8,1024], index: 0, kind: input, shape index: {}]
  %s1 = inlined_call_operand.vmem [shape: f32[4,8], index: 1, kind: input, shape index: {}]
  %s2 = inlined_call_operand.vmem [shape: f32[4,1], index: 2, kind: input, shape index: {}]
  %s3 = inlined_call_operand.vmem [shape: f32[2,4,1024], index: 3, kind: output, shape index: {}]
  %s4 = sld [smem:[#allocation0]]
  $region45: #{up_forward.6} parent=0
    _
  %s6 = ssub.s32 1, %s4
  %s7 = scalar_select 0, %s6, %s4
  loop: start=0, step=1, limit=4
  $region2: #{up_forward.6} parent=0 // loop_pre_header
    _
  $region3: #{up_forward.6} parent=0 // loop_header
    %s9 = sphi 0, %s13
    %p10 = scmp.ge.s32.totalorder %s9, 4
    %s16 = sphi 0, %s28
    %s17 = sphi 0, %s24
    %s18 = sphi 0, %s16
    %s19 = sphi 0, %s17
    %s20 = sphi 0, %s18
    %s21 = sphi 0, %s19
    %s33 = sphi 0, %s35
    %s36 = sphi 0, %s33
    %s37 = sphi 0, %s36
    %s53 = sphi 0, %s37
    %s57 = sphi 0, %s57
    %s59 = sphi 0, %s57
    %s60 = sphi 0, %s59
    %s74 = sphi 0, %s60
    %s78 = sphi 0, %s78
    %s80 = sphi 0, %s78
    %s81 = sphi 0, %s80
    %s95 = sphi 0, %s81
    %s103 = sphi 0, %s105
    %s106 = sphi 0, %s103
    %s107 = sphi 0, %s106
    %s123 = sphi 0, %s107
  $region4: #{up_forward.6} parent=0 // loop_header_branch
    %12 = sbr.rel (%p10) target = $region8
  $region5: #{up_forward.6} parent=0 // loop_body
    %s14 = ssub.s32 %s9, 1
    %s15 = ssub.s32 %s9, 2
    %s22 = sadd.s32 1, %s17
    %p23 = scmp.ge.s32.totalorder %s22, 1
    %s24 = scalar_select %p23, 0, %s22
    %s25 = sadd.s32 1, %s16
    %s26 = scalar_select %p23, %s25, %s16
    %p27 = scmp.ge.s32.totalorder %s26, 2
    %s28 = scalar_select %p27, 0, %s26
    %s29 = ssub.s32 %s16, %s28
    %s30 = ssub.s32 %s17, %s24
    %s31 = sor.u32 %s29, %s30
    %p32 = scmp.eq.s32.totalorder %s31, 0
    %s34 = sadd.s32 %s33, 1
    %s35 = scalar_select %p32, %s33, %s34
    %p38 = pneg %p32
    %p39 = scmp.eq.s32.totalorder %s9, 1
    %p40 = por %p38, %p39
    %p41 = scmp.ne.s32.totalorder %s33, %s36
    %p42 = scmp.eq.s32.totalorder %s9, 0
    %p43 = por %p41, %p42
    %p44 = scmp.ne.s32.totalorder %s33, %s36
    %p45 = scmp.eq.s32.totalorder %s14, 1
    %p46 = por %p44, %p45
    %p47 = scmp.ne.s32.totalorder %s36, %s37
    %p48 = scmp.eq.s32.totalorder %s14, 0
    %p49 = por %p47, %p48
    %p50 = scmp.ne.s32.totalorder %s36, %s37
    %p51 = scmp.eq.s32.totalorder %s15, 1
    %p52 = por %p50, %p51
    %p54 = scmp.ne.s32.totalorder %s37, %s53
    %p55 = scmp.eq.s32.totalorder %s15, 0
    %p56 = por %p54, %p55
    %s58 = sadd.s32 %s57, 1
    %p61 = scmp.eq.s32.totalorder %s9, 1
    %p62 = scmp.ne.s32.totalorder %s57, %s59
    %p63 = scmp.eq.s32.totalorder %s9, 0
    %p64 = por %p62, %p63
    %p65 = scmp.ne.s32.totalorder %s57, %s59
    %p66 = scmp.eq.s32.totalorder %s14, 1
    %p67 = por %p65, %p66
    %p68 = scmp.ne.s32.totalorder %s59, %s60
    %p69 = scmp.eq.s32.totalorder %s14, 0
    %p70 = por %p68, %p69
    %p71 = scmp.ne.s32.totalorder %s59, %s60
    %p72 = scmp.eq.s32.totalorder %s15, 1
    %p73 = por %p71, %p72
    %p75 = scmp.ne.s32.totalorder %s60, %s74
    %p76 = scmp.eq.s32.totalorder %s15, 0
    %p77 = por %p75, %p76
    %s79 = sadd.s32 %s78, 1
    %p82 = scmp.eq.s32.totalorder %s9, 1
    %p83 = scmp.ne.s32.totalorder %s78, %s80
    %p84 = scmp.eq.s32.totalorder %s9, 0
    %p85 = por %p83, %p84
    %p86 = scmp.ne.s32.totalorder %s78, %s80
    %p87 = scmp.eq.s32.totalorder %s14, 1
    %p88 = por %p86, %p87
    %p89 = scmp.ne.s32.totalorder %s80, %s81
    %p90 = scmp.eq.s32.totalorder %s14, 0
    %p91 = por %p89, %p90
    %p92 = scmp.ne.s32.totalorder %s80, %s81
    %p93 = scmp.eq.s32.totalorder %s15, 1
    %p94 = por %p92, %p93
    %p96 = scmp.ne.s32.totalorder %s81, %s95
    %p97 = scmp.eq.s32.totalorder %s15, 0
    %p98 = por %p96, %p97
    %s99 = ssub.s32 %s16, %s28
    %s100 = ssub.s32 %s17, %s24
    %s101 = sor.u32 %s99, %s100
    %p102 = scmp.eq.s32.totalorder %s101, 0
    %s104 = sadd.s32 %s103, 1
    %s105 = scalar_select %p102, %s103, %s104
    %p108 = pneg %p102
    %p109 = scmp.eq.s32.totalorder %s9, 1
    %p110 = por %p108, %p109
    %p111 = scmp.ne.s32.totalorder %s103, %s106
    %p112 = scmp.eq.s32.totalorder %s9, 0
    %p113 = por %p111, %p112
    %p114 = scmp.ne.s32.totalorder %s103, %s106
    %p115 = scmp.eq.s32.totalorder %s14, 1
    %p116 = por %p114, %p115
    %p117 = scmp.ne.s32.totalorder %s106, %s107
    %p118 = scmp.eq.s32.totalorder %s14, 0
    %p119 = por %p117, %p118
    %p120 = scmp.ne.s32.totalorder %s106, %s107
    %p121 = scmp.eq.s32.totalorder %s15, 1
    %p122 = por %p120, %p121
    %p124 = scmp.ne.s32.totalorder %s107, %s123
    %p125 = scmp.eq.s32.totalorder %s15, 0
    %p126 = por %p124, %p125
    %p127 = scmp.le.s32.totalorder 1, %s9
    %p128 = scmp.lt.s32.totalorder %s9, 3
    %p129 = pnand %p127, %p128
    %p130 = pneg %p129
    // Predicated region
    $region9: #{up_forward.6} parent=5 // pred_check
      _
    $region10: #{up_forward.6} parent=5 // pred_check_branch
      %132 = sbr.rel (%p129) target = $region12
    $region11: #{up_forward.6} parent=5 // pred_region
      %s133 = ssub.s32 %s9, 1
      // Predicated region
      $region13: #{up_forward.6} parent=11 // pred_check
        %p134 = pneg %p70
      $region14: #{up_forward.6} parent=11 // pred_check_branch
        %136 = sbr.rel (%p134) target = $region16
      $region15: #{up_forward.6} parent=11 // pred_region
        _
      $region16: #{up_forward.6} parent=11 // pred_fallthru
        _
      // Predicated region
      $region17: #{up_forward.6} parent=11 // pred_check
        %p137 = pneg %p91
      $region18: #{up_forward.6} parent=11 // pred_check_branch
        %139 = sbr.rel (%p137) target = $region20
      $region19: #{up_forward.6} parent=11 // pred_region
        _
      $region20: #{up_forward.6} parent=11 // pred_fallthru
        _
    $region12: #{up_forward.6} parent=5 // pred_fallthru
      _
    %p140 = scmp.lt.s32.totalorder %s9, 2
    // Predicated region
    $region21: #{up_forward.6} parent=5 // pred_check
      %p141 = pneg %p140
    $region22: #{up_forward.6} parent=5 // pred_check_branch
      %143 = sbr.rel (%p141) target = $region24
    $region23: #{up_forward.6} parent=5 // pred_region
      // Predicated region
      $region25: #{up_forward.6} parent=23 // pred_check
        %p144 = pneg %p43
      $region26: #{up_forward.6} parent=23 // pred_check_branch
        %146 = sbr.rel (%p144) target = $region28
      $region27: #{up_forward.6} parent=23 // pred_region
        %s147 = smul.u32 8, %s17
        %p148 = scmp.lt.s32.totalorder %s16, 1
        %s149 = scalar_select %p148, %s16, 1
        %p150 = scmp.lt.s32.totalorder %s147, 7
        %s151 = scalar_select %p150, %s147, 7
        %s152 = smul.addr %s149, 8
        %s153 = sadd.s32 %s151, %s152
        %s154 = smul.addr %s153, 8
        %s155 = scalar_lea.vmem %s0, %s154
        %s156 = smul.u32 8, %s17
      $region28: #{up_forward.6} parent=23 // pred_fallthru
        _
    $region24: #{up_forward.6} parent=5 // pred_fallthru
      _
    %p157 = scmp.le.s32.totalorder 1, %s9
    %p158 = scmp.lt.s32.totalorder %s9, 3
    %p159 = pnand %p157, %p158
    %p160 = pneg %p159
    // Predicated region
    $region29: #{up_forward.6} parent=5 // pred_check
      _
    $region30: #{up_forward.6} parent=5 // pred_check_branch
      %162 = sbr.rel (%p159) target = $region32
    $region31: #{up_forward.6} parent=5 // pred_region
      %s163 = ssub.s32 %s9, 1
      %s164 = smul.u32 8, %s19
      %p165 = scmp.lt.s32.totalorder %s18, 1
      %s166 = scalar_select %p165, %s18, 1
      %p167 = scmp.lt.s32.totalorder %s164, 7
      %s168 = scalar_select %p167, %s164, 7
      %s169 = smul.addr %s166, 8
      %s170 = sadd.s32 %s168, %s169
      %s171 = smul.addr %s170, 8
      %s172 = scalar_lea.vmem %s0, %s171
      %p173 = pneg %p49
      %p174 = pneg %p46
      %p175 = pneg %p70
      %p176 = pneg %p67
      %p177 = pneg %p91
      %p178 = pneg %p88
      %p179 = pneg %p119
      %p180 = pneg %p116
      %s181 = smul.u32 8, %s19
      %p182 = scmp.lt.s32.totalorder %s18, 1
      %s183 = scalar_select %p182, %s18, 1
      %p184 = scmp.lt.s32.totalorder %s181, 7
      %s185 = scalar_select %p184, %s181, 7
      %s186 = smul.addr %s183, 8
      %s187 = sadd.s32 %s185, %s186
      %s188 = smul.addr %s187, 4
      %s189 = scalar_lea.vmem %s3, %s188
      %s190 = smul.u32 8, %s19
      %p191 = scmp.lt.s32.totalorder %s18, 1
      %s192 = scalar_select %p191, %s18, 1
      %p193 = scmp.lt.s32.totalorder %s190, 7
      %s194 = scalar_select %p193, %s190, 7
      %s195 = smul.addr %s192, 8
      %s196 = sadd.s32 %s194, %s195
      %s197 = smul.addr %s196, 8
      %s198 = scalar_lea.vmem %s0, %s197
      %s199 = smul.u32 8, %s19
      %s200 = smul.u32 8, %s19
      %p201 = scmp.lt.s32.totalorder %s18, 1
      %s202 = scalar_select %p201, %s18, 1
      %p203 = scmp.lt.s32.totalorder %s200, 7
      %s204 = scalar_select %p203, %s200, 7
      %s205 = smul.addr %s202, 8
      %s206 = sadd.s32 %s204, %s205
      %s207 = smul.addr %s206, 4
      %s208 = scalar_lea.vmem %s3, %s207
      %s209 = smul.u32 8, %s19
      %v210 = vld [vmem:[%s1] sm:$0xf]
      %v211 = vld [vmem:[%s198] sm:$0xff]
      %v212 = vld [vmem:[%s198 + $0x8] sm:$0xff]
      %v213 = vld [vmem:[%s198 + $0x10] sm:$0xff]
      %v214 = vld [vmem:[%s198 + $0x18] sm:$0xff]
      %v215 = vld [vmem:[%s198 + $0x20] sm:$0xff]
      %v216 = vld [vmem:[%s198 + $0x28] sm:$0xff]
      %v217 = vld [vmem:[%s198 + $0x30] sm:$0xff]
      %v218 = vld [vmem:[%s198 + $0x38] sm:$0xff]
      %v219 = vld [vmem:[%s2] sm:$0xf]
      %221 = vset.pattern.permute.xlu0 0
      %222 = vperm.xlu0 %221, %v219
      %v223 = vpop.permute.xlu0 %222
      %vm225 = vcmask 64512
      %v227 = vsel %vm225, %v210, 0
      %229 = vmatpush.msra.mxu0 0.0
      %230 = vmatpush.msra.mxu0 0.0
      %231 = vmatpush.msra.mxu0 0.0
      %232 = vmatpush.msra.mxu0 0.0
      %233 = vmatpush.msra.mxu0 0.0
      %234 = vmatpush.msra.mxu0 0.0
      %235 = vmatpush.msra.mxu0 0.0
      %236 = vmatpush.msra.mxu0 0.0
      %237 = vmatpush.msra.mxu0 0.0
      %238 = vmatpush.msra.mxu0 0.0
      %239 = vmatpush.msra.mxu0 0.0
      %240 = vmatpush.msra.mxu0 0.0
      %241 = vmatpush.msra.mxu0 0.0
      %242 = vmatpush.msra.mxu0 0.0
      %243 = vmatpush.msra.mxu0 0.0
      %244 = vmatpush.msra.mxu0 %v211
      %245 = vmatmul.f32.gmra.mxu0 %v227
      %v246 = vpop.f32.mrf.mxu0
      %v247 = vadd.f32 %v223, %v246
      %248 = vdwg.mxu0
      %249 = vmatpush.msra.mxu0 0.0
      %250 = vmatpush.msra.mxu0 0.0
      %251 = vmatpush.msra.mxu0 0.0
      %252 = vmatpush.msra.mxu0 0.0
      %253 = vmatpush.msra.mxu0 0.0
      %254 = vmatpush.msra.mxu0 0.0
      %255 = vmatpush.msra.mxu0 0.0
      %256 = vmatpush.msra.mxu0 0.0
      %257 = vmatpush.msra.mxu0 0.0
      %258 = vmatpush.msra.mxu0 0.0
      %259 = vmatpush.msra.mxu0 0.0
      %260 = vmatpush.msra.mxu0 0.0
      %261 = vmatpush.msra.mxu0 0.0
      %262 = vmatpush.msra.mxu0 0.0
      %263 = vmatpush.msra.mxu0 0.0
      %264 = vmatpush.msra.mxu0 %v212
      %265 = vmatmul.f32.gmra.mxu0 %v227
      %v266 = vpop.f32.mrf.mxu0
      %v267 = vadd.f32 %v223, %v266
      %268 = vdwg.mxu0
      %269 = vmatpush.msra.mxu0 0.0
      %270 = vmatpush.msra.mxu0 0.0
      %271 = vmatpush.msra.mxu0 0.0
      %272 = vmatpush.msra.mxu0 0.0
      %273 = vmatpush.msra.mxu0 0.0
      %274 = vmatpush.msra.mxu0 0.0
      %275 = vmatpush.msra.mxu0 0.0
      %276 = vmatpush.msra.mxu0 0.0
      %277 = vmatpush.msra.mxu0 0.0
      %278 = vmatpush.msra.mxu0 0.0
      %279 = vmatpush.msra.mxu0 0.0
      %280 = vmatpush.msra.mxu0 0.0
      %281 = vmatpush.msra.mxu0 0.0
      %282 = vmatpush.msra.mxu0 0.0
      %283 = vmatpush.msra.mxu0 0.0
      %284 = vmatpush.msra.mxu0 %v213
      %285 = vmatmul.f32.gmra.mxu0 %v227
      %v286 = vpop.f32.mrf.mxu0
      %v287 = vadd.f32 %v223, %v286
      %288 = vdwg.mxu0
      %289 = vmatpush.msra.mxu0 0.0
      %290 = vmatpush.msra.mxu0 0.0
      %291 = vmatpush.msra.mxu0 0.0
      %292 = vmatpush.msra.mxu0 0.0
      %293 = vmatpush.msra.mxu0 0.0
      %294 = vmatpush.msra.mxu0 0.0
      %295 = vmatpush.msra.mxu0 0.0
      %296 = vmatpush.msra.mxu0 0.0
      %297 = vmatpush.msra.mxu0 0.0
      %298 = vmatpush.msra.mxu0 0.0
      %299 = vmatpush.msra.mxu0 0.0
      %300 = vmatpush.msra.mxu0 0.0
      %301 = vmatpush.msra.mxu0 0.0
      %302 = vmatpush.msra.mxu0 0.0
      %303 = vmatpush.msra.mxu0 0.0
      %304 = vmatpush.msra.mxu0 %v214
      %305 = vmatmul.f32.gmra.mxu0 %v227
      %v306 = vpop.f32.mrf.mxu0
      %v307 = vadd.f32 %v223, %v306
      %308 = vdwg.mxu0
      %309 = vmatpush.msra.mxu0 0.0
      %310 = vmatpush.msra.mxu0 0.0
      %311 = vmatpush.msra.mxu0 0.0
      %312 = vmatpush.msra.mxu0 0.0
      %313 = vmatpush.msra.mxu0 0.0
      %314 = vmatpush.msra.mxu0 0.0
      %315 = vmatpush.msra.mxu0 0.0
      %316 = vmatpush.msra.mxu0 0.0
      %317 = vmatpush.msra.mxu0 0.0
      %318 = vmatpush.msra.mxu0 0.0
      %319 = vmatpush.msra.mxu0 0.0
      %320 = vmatpush.msra.mxu0 0.0
      %321 = vmatpush.msra.mxu0 0.0
      %322 = vmatpush.msra.mxu0 0.0
      %323 = vmatpush.msra.mxu0 0.0
      %324 = vmatpush.msra.mxu0 %v215
      %325 = vmatmul.f32.gmra.mxu0 %v227
      %v326 = vpop.f32.mrf.mxu0
      %v327 = vadd.f32 %v223, %v326
      %328 = vdwg.mxu0
      %329 = vmatpush.msra.mxu0 0.0
      %330 = vmatpush.msra.mxu0 0.0
      %331 = vmatpush.msra.mxu0 0.0
      %332 = vmatpush.msra.mxu0 0.0
      %333 = vmatpush.msra.mxu0 0.0
      %334 = vmatpush.msra.mxu0 0.0
      %335 = vmatpush.msra.mxu0 0.0
      %336 = vmatpush.msra.mxu0 0.0
      %337 = vmatpush.msra.mxu0 0.0
      %338 = vmatpush.msra.mxu0 0.0
      %339 = vmatpush.msra.mxu0 0.0
      %340 = vmatpush.msra.mxu0 0.0
      %341 = vmatpush.msra.mxu0 0.0
      %342 = vmatpush.msra.mxu0 0.0
      %343 = vmatpush.msra.mxu0 0.0
      %344 = vmatpush.msra.mxu0 %v216
      %345 = vmatmul.f32.gmra.mxu0 %v227
      %v346 = vpop.f32.mrf.mxu0
      %v347 = vadd.f32 %v223, %v346
      %348 = vdwg.mxu0
      %349 = vmatpush.msra.mxu0 0.0
      %350 = vmatpush.msra.mxu0 0.0
      %351 = vmatpush.msra.mxu0 0.0
      %352 = vmatpush.msra.mxu0 0.0
      %353 = vmatpush.msra.mxu0 0.0
      %354 = vmatpush.msra.mxu0 0.0
      %355 = vmatpush.msra.mxu0 0.0
      %356 = vmatpush.msra.mxu0 0.0
      %357 = vmatpush.msra.mxu0 0.0
      %358 = vmatpush.msra.mxu0 0.0
      %359 = vmatpush.msra.mxu0 0.0
      %360 = vmatpush.msra.mxu0 0.0
      %361 = vmatpush.msra.mxu0 0.0
      %362 = vmatpush.msra.mxu0 0.0
      %363 = vmatpush.msra.mxu0 0.0
      %364 = vmatpush.msra.mxu0 %v217
      %365 = vmatmul.f32.gmra.mxu0 %v227
      %v366 = vpop.f32.mrf.mxu0
      %v367 = vadd.f32 %v223, %v366
      %368 = vdwg.mxu0
      %369 = vmatpush.msra.mxu0 0.0
      %370 = vmatpush.msra.mxu0 0.0
      %371 = vmatpush.msra.mxu0 0.0
      %372 = vmatpush.msra.mxu0 0.0
      %373 = vmatpush.msra.mxu0 0.0
      %374 = vmatpush.msra.mxu0 0.0
      %375 = vmatpush.msra.mxu0 0.0
      %376 = vmatpush.msra.mxu0 0.0
      %377 = vmatpush.msra.mxu0 0.0
      %378 = vmatpush.msra.mxu0 0.0
      %379 = vmatpush.msra.mxu0 0.0
      %380 = vmatpush.msra.mxu0 0.0
      %381 = vmatpush.msra.mxu0 0.0
      %382 = vmatpush.msra.mxu0 0.0
      %383 = vmatpush.msra.mxu0 0.0
      %384 = vmatpush.msra.mxu0 %v218
      %385 = vmatmul.f32.gmra.mxu0 %v227
      %v386 = vpop.f32.mrf.mxu0
      %v387 = vadd.f32 %v223, %v386
      %388 = vdwg.mxu0
      %v389 = vmax.f32 %v247, 0.0
      %v390 = vmax.f32 %v267, 0.0
      %v391 = vmax.f32 %v287, 0.0
      %v392 = vmax.f32 %v307, 0.0
      %v393 = vmax.f32 %v327, 0.0
      %v394 = vmax.f32 %v347, 0.0
      %v395 = vmax.f32 %v367, 0.0
      %v396 = vmax.f32 %v387, 0.0
      %v405 = vrot.slane %v390, 4
      %v406 = vrot.slane %v392, 4
      %v407 = vrot.slane %v394, 4
      %v408 = vrot.slane %v396, 4
      %vm409 = vcmask 1043456
      %v410 = vsel %vm409, %v389, %v405
      %v411 = vsel %vm409, %v391, %v406
      %v412 = vsel %vm409, %v393, %v407
      %v413 = vsel %vm409, %v395, %v408
      %418 = vst [vmem:[%s208] sm:$0xff] %v410
      %419 = vst [vmem:[%s208 + $0x8] sm:$0xff] %v411
      %420 = vst [vmem:[%s208 + $0x10] sm:$0xff] %v412
      %421 = vst [vmem:[%s208 + $0x18] sm:$0xff] %v413
      %s422 = smul.u32 8, %s19
      %p423 = scmp.lt.s32.totalorder %s18, 1
      %s424 = scalar_select %p423, %s18, 1
      %p425 = scmp.lt.s32.totalorder %s422, 7
      %s426 = scalar_select %p425, %s422, 7
      %s427 = smul.addr %s424, 8
      %s428 = sadd.s32 %s426, %s427
      %s429 = smul.addr %s428, 4
      %s430 = scalar_lea.vmem %s3, %s429
      // Predicated region
      $region33: #{up_forward.6} parent=31 // pred_check
        %p431 = pneg %p116
      $region34: #{up_forward.6} parent=31 // pred_check_branch
        %433 = sbr.rel (%p431) target = $region36
      $region35: #{up_forward.6} parent=31 // pred_region
        %s434 = smul.u32 8, %s19
      $region36: #{up_forward.6} parent=31 // pred_fallthru
        _
    $region32: #{up_forward.6} parent=5 // pred_fallthru
      _
    %p435 = scmp.le.s32.totalorder 2, %s9
    // Predicated region
    $region37: #{up_forward.6} parent=5 // pred_check
      %p436 = pneg %p435
    $region38: #{up_forward.6} parent=5 // pred_check_branch
      %438 = sbr.rel (%p436) target = $region40
    $region39: #{up_forward.6} parent=5 // pred_region
      %s439 = ssub.s32 %s9, 2
      // Predicated region
      $region41: #{up_forward.6} parent=39 // pred_check
        %p440 = pneg %p122
      $region42: #{up_forward.6} parent=39 // pred_check_branch
        %442 = sbr.rel (%p440) target = $region44
      $region43: #{up_forward.6} parent=39 // pred_region
        %s443 = smul.u32 8, %s21
        %p444 = scmp.lt.s32.totalorder %s20, 1
        %s445 = scalar_select %p444, %s20, 1
        %p446 = scmp.lt.s32.totalorder %s443, 7
        %s447 = scalar_select %p446, %s443, 7
        %s448 = smul.addr %s445, 8
        %s449 = sadd.s32 %s447, %s448
        %s450 = smul.addr %s449, 4
        %s451 = scalar_lea.vmem %s3, %s450
      $region44: #{up_forward.6} parent=39 // pred_fallthru
        _
    $region40: #{up_forward.6} parent=5 // pred_fallthru
      _
  $region6: #{up_forward.6} parent=0 // loop_footer
    %s13 = sadd.s32 1, %s9
  $region7: #{up_forward.6} parent=0 // loop_footer_branch
    %8 = sbr.rel target = $region3
  $region8: #{up_forward.6} parent=0 // loop_exit
    _

// kernel: up_forward.4
$region0: #{up_forward.4}
  #allocation0 [shape = 'u32[]', space=smem, size = 0x4, offset = 0x4, fixed_abs, tag = 'smem constant byte address 0x4 - core index']
  #allocation1 [shape = 'u32[72,128]{1,0:T(1,128)}', space=vmem, size = 0x9000, scoped, tag = 'internal scratch']
  %s0 = inlined_call_operand.vmem [shape: f32[2,16,256], index: 0, kind: input, shape index: {}]
  %s1 = inlined_call_operand.vmem [shape: f32[8,16], index: 1, kind: input, shape index: {}]
  %s2 = inlined_call_operand.vmem [shape: f32[8,1], index: 2, kind: input, shape index: {}]
  %s3 = inlined_call_operand.vmem [shape: f32[2,8,256], index: 3, kind: output, shape index: {}]
  %s4 = sld [smem:[#allocation0]]
  $region45: #{up_forward.4} parent=0
    _
  %s6 = ssub.s32 1, %s4
  %s7 = scalar_select 0, %s6, %s4
  loop: start=0, step=1, limit=4
  $region2: #{up_forward.4} parent=0 // loop_pre_header
    _
  $region3: #{up_forward.4} parent=0 // loop_header
    %s9 = sphi 0, %s13
    %p10 = scmp.ge.s32.totalorder %s9, 4
    %s16 = sphi 0, %s28
    %s17 = sphi 0, %s24
    %s18 = sphi 0, %s16
    %s19 = sphi 0, %s17
    %s20 = sphi 0, %s18
    %s21 = sphi 0, %s19
    %s33 = sphi 0, %s35
    %s36 = sphi 0, %s33
    %s37 = sphi 0, %s36
    %s53 = sphi 0, %s37
    %s57 = sphi 0, %s57
    %s59 = sphi 0, %s57
    %s60 = sphi 0, %s59
    %s74 = sphi 0, %s60
    %s78 = sphi 0, %s78
    %s80 = sphi 0, %s78
    %s81 = sphi 0, %s80
    %s95 = sphi 0, %s81
    %s103 = sphi 0, %s105
    %s106 = sphi 0, %s103
    %s107 = sphi 0, %s106
    %s123 = sphi 0, %s107
  $region4: #{up_forward.4} parent=0 // loop_header_branch
    %12 = sbr.rel (%p10) target = $region8
  $region5: #{up_forward.4} parent=0 // loop_body
    %s14 = ssub.s32 %s9, 1
    %s15 = ssub.s32 %s9, 2
    %s22 = sadd.s32 1, %s17
    %p23 = scmp.ge.s32.totalorder %s22, 1
    %s24 = scalar_select %p23, 0, %s22
    %s25 = sadd.s32 1, %s16
    %s26 = scalar_select %p23, %s25, %s16
    %p27 = scmp.ge.s32.totalorder %s26, 2
    %s28 = scalar_select %p27, 0, %s26
    %s29 = ssub.s32 %s16, %s28
    %s30 = ssub.s32 %s17, %s24
    %s31 = sor.u32 %s29, %s30
    %p32 = scmp.eq.s32.totalorder %s31, 0
    %s34 = sadd.s32 %s33, 1
    %s35 = scalar_select %p32, %s33, %s34
    %p38 = pneg %p32
    %p39 = scmp.eq.s32.totalorder %s9, 1
    %p40 = por %p38, %p39
    %p41 = scmp.ne.s32.totalorder %s33, %s36
    %p42 = scmp.eq.s32.totalorder %s9, 0
    %p43 = por %p41, %p42
    %p44 = scmp.ne.s32.totalorder %s33, %s36
    %p45 = scmp.eq.s32.totalorder %s14, 1
    %p46 = por %p44, %p45
    %p47 = scmp.ne.s32.totalorder %s36, %s37
    %p48 = scmp.eq.s32.totalorder %s14, 0
    %p49 = por %p47, %p48
    %p50 = scmp.ne.s32.totalorder %s36, %s37
    %p51 = scmp.eq.s32.totalorder %s15, 1
    %p52 = por %p50, %p51
    %p54 = scmp.ne.s32.totalorder %s37, %s53
    %p55 = scmp.eq.s32.totalorder %s15, 0
    %p56 = por %p54, %p55
    %s58 = sadd.s32 %s57, 1
    %p61 = scmp.eq.s32.totalorder %s9, 1
    %p62 = scmp.ne.s32.totalorder %s57, %s59
    %p63 = scmp.eq.s32.totalorder %s9, 0
    %p64 = por %p62, %p63
    %p65 = scmp.ne.s32.totalorder %s57, %s59
    %p66 = scmp.eq.s32.totalorder %s14, 1
    %p67 = por %p65, %p66
    %p68 = scmp.ne.s32.totalorder %s59, %s60
    %p69 = scmp.eq.s32.totalorder %s14, 0
    %p70 = por %p68, %p69
    %p71 = scmp.ne.s32.totalorder %s59, %s60
    %p72 = scmp.eq.s32.totalorder %s15, 1
    %p73 = por %p71, %p72
    %p75 = scmp.ne.s32.totalorder %s60, %s74
    %p76 = scmp.eq.s32.totalorder %s15, 0
    %p77 = por %p75, %p76
    %s79 = sadd.s32 %s78, 1
    %p82 = scmp.eq.s32.totalorder %s9, 1
    %p83 = scmp.ne.s32.totalorder %s78, %s80
    %p84 = scmp.eq.s32.totalorder %s9, 0
    %p85 = por %p83, %p84
    %p86 = scmp.ne.s32.totalorder %s78, %s80
    %p87 = scmp.eq.s32.totalorder %s14, 1
    %p88 = por %p86, %p87
    %p89 = scmp.ne.s32.totalorder %s80, %s81
    %p90 = scmp.eq.s32.totalorder %s14, 0
    %p91 = por %p89, %p90
    %p92 = scmp.ne.s32.totalorder %s80, %s81
    %p93 = scmp.eq.s32.totalorder %s15, 1
    %p94 = por %p92, %p93
    %p96 = scmp.ne.s32.totalorder %s81, %s95
    %p97 = scmp.eq.s32.totalorder %s15, 0
    %p98 = por %p96, %p97
    %s99 = ssub.s32 %s16, %s28
    %s100 = ssub.s32 %s17, %s24
    %s101 = sor.u32 %s99, %s100
    %p102 = scmp.eq.s32.totalorder %s101, 0
    %s104 = sadd.s32 %s103, 1
    %s105 = scalar_select %p102, %s103, %s104
    %p108 = pneg %p102
    %p109 = scmp.eq.s32.totalorder %s9, 1
    %p110 = por %p108, %p109
    %p111 = scmp.ne.s32.totalorder %s103, %s106
    %p112 = scmp.eq.s32.totalorder %s9, 0
    %p113 = por %p111, %p112
    %p114 = scmp.ne.s32.totalorder %s103, %s106
    %p115 = scmp.eq.s32.totalorder %s14, 1
    %p116 = por %p114, %p115
    %p117 = scmp.ne.s32.totalorder %s106, %s107
    %p118 = scmp.eq.s32.totalorder %s14, 0
    %p119 = por %p117, %p118
    %p120 = scmp.ne.s32.totalorder %s106, %s107
    %p121 = scmp.eq.s32.totalorder %s15, 1
    %p122 = por %p120, %p121
    %p124 = scmp.ne.s32.totalorder %s107, %s123
    %p125 = scmp.eq.s32.totalorder %s15, 0
    %p126 = por %p124, %p125
    %p127 = scmp.le.s32.totalorder 1, %s9
    %p128 = scmp.lt.s32.totalorder %s9, 3
    %p129 = pnand %p127, %p128
    %p130 = pneg %p129
    // Predicated region
    $region9: #{up_forward.4} parent=5 // pred_check
      _
    $region10: #{up_forward.4} parent=5 // pred_check_branch
      %132 = sbr.rel (%p129) target = $region12
    $region11: #{up_forward.4} parent=5 // pred_region
      %s133 = ssub.s32 %s9, 1
      // Predicated region
      $region13: #{up_forward.4} parent=11 // pred_check
        %p134 = pneg %p70
      $region14: #{up_forward.4} parent=11 // pred_check_branch
        %136 = sbr.rel (%p134) target = $region16
      $region15: #{up_forward.4} parent=11 // pred_region
        _
      $region16: #{up_forward.4} parent=11 // pred_fallthru
        _
      // Predicated region
      $region17: #{up_forward.4} parent=11 // pred_check
        %p137 = pneg %p91
      $region18: #{up_forward.4} parent=11 // pred_check_branch
        %139 = sbr.rel (%p137) target = $region20
      $region19: #{up_forward.4} parent=11 // pred_region
        _
      $region20: #{up_forward.4} parent=11 // pred_fallthru
        _
    $region12: #{up_forward.4} parent=5 // pred_fallthru
      _
    %p140 = scmp.lt.s32.totalorder %s9, 2
    // Predicated region
    $region21: #{up_forward.4} parent=5 // pred_check
      %p141 = pneg %p140
    $region22: #{up_forward.4} parent=5 // pred_check_branch
      %143 = sbr.rel (%p141) target = $region24
    $region23: #{up_forward.4} parent=5 // pred_region
      // Predicated region
      $region25: #{up_forward.4} parent=23 // pred_check
        %p144 = pneg %p43
      $region26: #{up_forward.4} parent=23 // pred_check_branch
        %146 = sbr.rel (%p144) target = $region28
      $region27: #{up_forward.4} parent=23 // pred_region
        %s147 = smul.u32 2, %s17
        %p148 = scmp.lt.s32.totalorder %s16, 1
        %s149 = scalar_select %p148, %s16, 1
        %p150 = scmp.lt.s32.totalorder %s147, 1
        %s151 = scalar_select %p150, %s147, 1
        %s152 = smul.addr %s149, 4
        %s153 = sadd.s32 %s151, %s152
        %s154 = smul.addr %s153, 8
        %s155 = scalar_lea.vmem %s0, %s154
        %s156 = smul.u32 2, %s17
      $region28: #{up_forward.4} parent=23 // pred_fallthru
        _
    $region24: #{up_forward.4} parent=5 // pred_fallthru
      _
    %p157 = scmp.le.s32.totalorder 1, %s9
    %p158 = scmp.lt.s32.totalorder %s9, 3
    %p159 = pnand %p157, %p158
    %p160 = pneg %p159
    // Predicated region
    $region29: #{up_forward.4} parent=5 // pred_check
      _
    $region30: #{up_forward.4} parent=5 // pred_check_branch
      %162 = sbr.rel (%p159) target = $region32
    $region31: #{up_forward.4} parent=5 // pred_region
      %s163 = ssub.s32 %s9, 1
      %s164 = smul.u32 2, %s19
      %p165 = scmp.lt.s32.totalorder %s18, 1
      %s166 = scalar_select %p165, %s18, 1
      %p167 = scmp.lt.s32.totalorder %s164, 1
      %s168 = scalar_select %p167, %s164, 1
      %s169 = smul.addr %s166, 4
      %s170 = sadd.s32 %s168, %s169
      %s171 = smul.addr %s170, 8
      %s172 = scalar_lea.vmem %s0, %s171
      %p173 = pneg %p49
      %p174 = pneg %p46
      %p175 = pneg %p70
      %p176 = pneg %p67
      %p177 = pneg %p91
      %p178 = pneg %p88
      %p179 = pneg %p119
      %p180 = pneg %p116
      %s181 = smul.u32 2, %s19
      %p182 = scmp.lt.s32.totalorder %s18, 1
      %s183 = scalar_select %p182, %s18, 1
      %p184 = scmp.lt.s32.totalorder %s181, 1
      %s185 = scalar_select %p184, %s181, 1
      %s186 = smul.addr %s183, 2
      %s187 = sadd.s32 %s185, %s186
      %s188 = smul.addr %s187, 8
      %s189 = scalar_lea.vmem %s3, %s188
      %s190 = smul.u32 2, %s19
      %p191 = scmp.lt.s32.totalorder %s18, 1
      %s192 = scalar_select %p191, %s18, 1
      %p193 = scmp.lt.s32.totalorder %s190, 1
      %s194 = scalar_select %p193, %s190, 1
      %s195 = smul.addr %s192, 4
      %s196 = sadd.s32 %s194, %s195
      %s197 = smul.addr %s196, 8
      %s198 = scalar_lea.vmem %s0, %s197
      %s199 = smul.u32 2, %s19
      %s200 = smul.u32 2, %s19
      %p201 = scmp.lt.s32.totalorder %s18, 1
      %s202 = scalar_select %p201, %s18, 1
      %p203 = scmp.lt.s32.totalorder %s200, 1
      %s204 = scalar_select %p203, %s200, 1
      %s205 = smul.addr %s202, 2
      %s206 = sadd.s32 %s204, %s205
      %s207 = smul.addr %s206, 8
      %s208 = scalar_lea.vmem %s3, %s207
      %s209 = smul.u32 2, %s19
      %v210 = vld [vmem:[%s1] sm:$0xff]
      %v211 = vld [vmem:[%s198] sm:$0xff]
      %v212 = vld [vmem:[%s198 + $0x8] sm:$0xff]
      %v213 = vld [vmem:[%s198 + $0x10] sm:$0xff]
      %v214 = vld [vmem:[%s198 + $0x18] sm:$0xff]
      %v215 = vld [vmem:[%s2] sm:$0xff]
      %217 = vset.pattern.permute.xlu0 0
      %218 = vperm.xlu0 %217, %v215
      %v219 = vpop.permute.xlu0 %218
      %vm221 = vcmask 130048
      %v223 = vsel %vm221, %v210, 0
      %225 = vmatpush.msra.mxu0 0.0
      %226 = vmatpush.msra.mxu0 0.0
      %227 = vmatpush.msra.mxu0 0.0
      %228 = vmatpush.msra.mxu0 0.0
      %229 = vmatpush.msra.mxu0 0.0
      %230 = vmatpush.msra.mxu0 0.0
      %231 = vmatpush.msra.mxu0 0.0
      %232 = vmatpush.msra.mxu0 0.0
      %233 = vmatpush.msra.mxu0 0.0
      %234 = vmatpush.msra.mxu0 0.0
      %235 = vmatpush.msra.mxu0 0.0
      %236 = vmatpush.msra.mxu0 0.0
      %237 = vmatpush.msra.mxu0 0.0
      %238 = vmatpush.msra.mxu0 0.0
      %239 = vmatpush.msra.mxu0 %v213
      %240 = vmatpush.msra.mxu0 %v211
      %241 = vmatmul.f32.gmra.mxu0 %v223
      %v242 = vpop.f32.mrf.mxu0
      %v243 = vadd.f32 %v219, %v242
      %244 = vdwg.mxu0
      %245 = vmatpush.msra.mxu0 0.0
      %246 = vmatpush.msra.mxu0 0.0
      %247 = vmatpush.msra.mxu0 0.0
      %248 = vmatpush.msra.mxu0 0.0
      %249 = vmatpush.msra.mxu0 0.0
      %250 = vmatpush.msra.mxu0 0.0
      %251 = vmatpush.msra.mxu0 0.0
      %252 = vmatpush.msra.mxu0 0.0
      %253 = vmatpush.msra.mxu0 0.0
      %254 = vmatpush.msra.mxu0 0.0
      %255 = vmatpush.msra.mxu0 0.0
      %256 = vmatpush.msra.mxu0 0.0
      %257 = vmatpush.msra.mxu0 0.0
      %258 = vmatpush.msra.mxu0 0.0
      %259 = vmatpush.msra.mxu0 %v214
      %260 = vmatpush.msra.mxu0 %v212
      %261 = vmatmul.f32.gmra.mxu0 %v223
      %v262 = vpop.f32.mrf.mxu0
      %v263 = vadd.f32 %v219, %v262
      %264 = vdwg.mxu0
      %v265 = vmax.f32 %v243, 0.0
      %v266 = vmax.f32 %v263, 0.0
      %267 = vst [vmem:[%s208] sm:$0xff] %v265
      %268 = vst [vmem:[%s208 + $0x8] sm:$0xff] %v266
      %s269 = smul.u32 2, %s19
      %p270 = scmp.lt.s32.totalorder %s18, 1
      %s271 = scalar_select %p270, %s18, 1
      %p272 = scmp.lt.s32.totalorder %s269, 1
      %s273 = scalar_select %p272, %s269, 1
      %s274 = smul.addr %s271, 2
      %s275 = sadd.s32 %s273, %s274
      %s276 = smul.addr %s275, 8
      %s277 = scalar_lea.vmem %s3, %s276
      // Predicated region
      $region33: #{up_forward.4} parent=31 // pred_check
        %p278 = pneg %p116
      $region34: #{up_forward.4} parent=31 // pred_check_branch
        %280 = sbr.rel (%p278) target = $region36
      $region35: #{up_forward.4} parent=31 // pred_region
        %s281 = smul.u32 2, %s19
      $region36: #{up_forward.4} parent=31 // pred_fallthru
        _
    $region32: #{up_forward.4} parent=5 // pred_fallthru
      _
    %p282 = scmp.le.s32.totalorder 2, %s9
    // Predicated region
    $region37: #{up_forward.4} parent=5 // pred_check
      %p283 = pneg %p282
    $region38: #{up_forward.4} parent=5 // pred_check_branch
      %285 = sbr.rel (%p283) target = $region40
    $region39: #{up_forward.4} parent=5 // pred_region
      %s286 = ssub.s32 %s9, 2
      // Predicated region
      $region41: #{up_forward.4} parent=39 // pred_check
        %p287 = pneg %p122
      $region42: #{up_forward.4} parent=39 // pred_check_branch
        %289 = sbr.rel (%p287) target = $region44
      $region43: #{up_forward.4} parent=39 // pred_region
        %s290 = smul.u32 2, %s21
        %p291 = scmp.lt.s32.totalorder %s20, 1
        %s292 = scalar_select %p291, %s20, 1
        %p293 = scmp.lt.s32.totalorder %s290, 1
        %s294 = scalar_select %p293, %s290, 1
        %s295 = smul.addr %s292, 2
        %s296 = sadd.s32 %s294, %s295
        %s297 = smul.addr %s296, 8
        %s298 = scalar_lea.vmem %s3, %s297
      $region44: #{up_forward.4} parent=39 // pred_fallthru
        _
    $region40: #{up_forward.4} parent=5 // pred_fallthru
      _
  $region6: #{up_forward.4} parent=0 // loop_footer
    %s13 = sadd.s32 1, %s9
  $region7: #{up_forward.4} parent=0 // loop_footer_branch
    %8 = sbr.rel target = $region3
  $region8: #{up_forward.4} parent=0 // loop_exit
    _

// kernel: up_forward.5
$region0: #{up_forward.5}
  #allocation0 [shape = 'u32[]', space=smem, size = 0x4, offset = 0x4, fixed_abs, tag = 'smem constant byte address 0x4 - core index']
  #allocation1 [shape = 'u32[72,128]{1,0:T(1,128)}', space=vmem, size = 0x9000, scoped, tag = 'internal scratch']
  %s0 = inlined_call_operand.vmem [shape: f32[16,16,16], index: 0, kind: input, shape index: {}]
  %s1 = inlined_call_operand.vmem [shape: f32[32,16], index: 1, kind: input, shape index: {}]
  %s2 = inlined_call_operand.vmem [shape: f32[16,32], index: 2, kind: input, shape index: {}]
  %s3 = inlined_call_operand.vmem [shape: f32[16,32,32], index: 3, kind: output, shape index: {}]
  %s4 = sld [smem:[#allocation0]]
  $region45: #{up_forward.5} parent=0
    _
  %s6 = ssub.s32 1, %s4
  %s7 = scalar_select 0, %s6, %s4
  loop: start=0, step=1, limit=4
  $region2: #{up_forward.5} parent=0 // loop_pre_header
    _
  $region3: #{up_forward.5} parent=0 // loop_header
    %s9 = sphi 0, %s13
    %p10 = scmp.ge.s32.totalorder %s9, 4
    %s19 = sphi 0, %s21
    %s22 = sphi 0, %s19
    %s23 = sphi 0, %s22
    %s39 = sphi 0, %s23
    %s43 = sphi 0, %s43
    %s45 = sphi 0, %s43
    %s46 = sphi 0, %s45
    %s60 = sphi 0, %s46
    %s64 = sphi 0, %s64
    %s66 = sphi 0, %s64
    %s67 = sphi 0, %s66
    %s81 = sphi 0, %s67
    %s87 = sphi 0, %s89
    %s90 = sphi 0, %s87
    %s91 = sphi 0, %s90
    %s107 = sphi 0, %s91
  $region4: #{up_forward.5} parent=0 // loop_header_branch
    %12 = sbr.rel (%p10) target = $region8
  $region5: #{up_forward.5} parent=0 // loop_body
    %s14 = ssub.s32 %s9, 1
    %s15 = ssub.s32 %s9, 2
    %s16 = sadd.s32 %s9, 1
    %s17 = ssub.s32 %s9, %s16
    %p18 = scmp.eq.s32.totalorder %s17, 0
    %s20 = sadd.s32 %s19, 1
    %s21 = scalar_select %p18, %s19, %s20
    %p24 = pneg %p18
    %p25 = scmp.eq.s32.totalorder %s9, 1
    %p26 = por %p24, %p25
    %p27 = scmp.ne.s32.totalorder %s19, %s22
    %p28 = scmp.eq.s32.totalorder %s9, 0
    %p29 = por %p27, %p28
    %p30 = scmp.ne.s32.totalorder %s19, %s22
    %p31 = scmp.eq.s32.totalorder %s14, 1
    %p32 = por %p30, %p31
    %p33 = scmp.ne.s32.totalorder %s22, %s23
    %p34 = scmp.eq.s32.totalorder %s14, 0
    %p35 = por %p33, %p34
    %p36 = scmp.ne.s32.totalorder %s22, %s23
    %p37 = scmp.eq.s32.totalorder %s15, 1
    %p38 = por %p36, %p37
    %p40 = scmp.ne.s32.totalorder %s23, %s39
    %p41 = scmp.eq.s32.totalorder %s15, 0
    %p42 = por %p40, %p41
    %s44 = sadd.s32 %s43, 1
    %p47 = scmp.eq.s32.totalorder %s9, 1
    %p48 = scmp.ne.s32.totalorder %s43, %s45
    %p49 = scmp.eq.s32.totalorder %s9, 0
    %p50 = por %p48, %p49
    %p51 = scmp.ne.s32.totalorder %s43, %s45
    %p52 = scmp.eq.s32.totalorder %s14, 1
    %p53 = por %p51, %p52
    %p54 = scmp.ne.s32.totalorder %s45, %s46
    %p55 = scmp.eq.s32.totalorder %s14, 0
    %p56 = por %p54, %p55
    %p57 = scmp.ne.s32.totalorder %s45, %s46
    %p58 = scmp.eq.s32.totalorder %s15, 1
    %p59 = por %p57, %p58
    %p61 = scmp.ne.s32.totalorder %s46, %s60
    %p62 = scmp.eq.s32.totalorder %s15, 0
    %p63 = por %p61, %p62
    %s65 = sadd.s32 %s64, 1
    %p68 = scmp.eq.s32.totalorder %s9, 1
    %p69 = scmp.ne.s32.totalorder %s64, %s66
    %p70 = scmp.eq.s32.totalorder %s9, 0
    %p71 = por %p69, %p70
    %p72 = scmp.ne.s32.totalorder %s64, %s66
    %p73 = scmp.eq.s32.totalorder %s14, 1
    %p74 = por %p72, %p73
    %p75 = scmp.ne.s32.totalorder %s66, %s67
    %p76 = scmp.eq.s32.totalorder %s14, 0
    %p77 = por %p75, %p76
    %p78 = scmp.ne.s32.totalorder %s66, %s67
    %p79 = scmp.eq.s32.totalorder %s15, 1
    %p80 = por %p78, %p79
    %p82 = scmp.ne.s32.totalorder %s67, %s81
    %p83 = scmp.eq.s32.totalorder %s15, 0
    %p84 = por %p82, %p83
    %s85 = ssub.s32 %s9, %s16
    %p86 = scmp.eq.s32.totalorder %s85, 0
    %s88 = sadd.s32 %s87, 1
    %s89 = scalar_select %p86, %s87, %s88
    %p92 = pneg %p86
    %p93 = scmp.eq.s32.totalorder %s9, 1
    %p94 = por %p92, %p93
    %p95 = scmp.ne.s32.totalorder %s87, %s90
    %p96 = scmp.eq.s32.totalorder %s9, 0
    %p97 = por %p95, %p96
    %p98 = scmp.ne.s32.totalorder %s87, %s90
    %p99 = scmp.eq.s32.totalorder %s14, 1
    %p100 = por %p98, %p99
    %p101 = scmp.ne.s32.totalorder %s90, %s91
    %p102 = scmp.eq.s32.totalorder %s14, 0
    %p103 = por %p101, %p102
    %p104 = scmp.ne.s32.totalorder %s90, %s91
    %p105 = scmp.eq.s32.totalorder %s15, 1
    %p106 = por %p104, %p105
    %p108 = scmp.ne.s32.totalorder %s91, %s107
    %p109 = scmp.eq.s32.totalorder %s15, 0
    %p110 = por %p108, %p109
    %p111 = scmp.le.s32.totalorder 1, %s9
    %p112 = scmp.lt.s32.totalorder %s9, 3
    %p113 = pnand %p111, %p112
    %p114 = pneg %p113
    // Predicated region
    $region9: #{up_forward.5} parent=5 // pred_check
      _
    $region10: #{up_forward.5} parent=5 // pred_check_branch
      %116 = sbr.rel (%p113) target = $region12
    $region11: #{up_forward.5} parent=5 // pred_region
      %s117 = ssub.s32 %s9, 1
      // Predicated region
      $region13: #{up_forward.5} parent=11 // pred_check
        %p118 = pneg %p56
      $region14: #{up_forward.5} parent=11 // pred_check_branch
        %120 = sbr.rel (%p118) target = $region16
      $region15: #{up_forward.5} parent=11 // pred_region
        _
      $region16: #{up_forward.5} parent=11 // pred_fallthru
        _
      // Predicated region
      $region17: #{up_forward.5} parent=11 // pred_check
        %p121 = pneg %p77
      $region18: #{up_forward.5} parent=11 // pred_check_branch
        %123 = sbr.rel (%p121) target = $region20
      $region19: #{up_forward.5} parent=11 // pred_region
        _
      $region20: #{up_forward.5} parent=11 // pred_fallthru
        _
    $region12: #{up_forward.5} parent=5 // pred_fallthru
      _
    %p124 = scmp.lt.s32.totalorder %s9, 2
    // Predicated region
    $region21: #{up_forward.5} parent=5 // pred_check
      %p125 = pneg %p124
    $region22: #{up_forward.5} parent=5 // pred_check_branch
      %127 = sbr.rel (%p125) target = $region24
    $region23: #{up_forward.5} parent=5 // pred_region
      // Predicated region
      $region25: #{up_forward.5} parent=23 // pred_check
        %p128 = pneg %p29
      $region26: #{up_forward.5} parent=23 // pred_check_branch
        %130 = sbr.rel (%p128) target = $region28
      $region27: #{up_forward.5} parent=23 // pred_region
        %s131 = smul.u32 8, %s9
        %p132 = scmp.lt.s32.totalorder %s131, 15
        %s133 = scalar_select %p132, %s131, 15
        %s134 = smul.addr %s133, 2
        %s135 = smul.addr %s134, 8
        %s136 = scalar_lea.vmem %s0, %s135
        %s137 = smul.u32 8, %s9
      $region28: #{up_forward.5} parent=23 // pred_fallthru
        _
    $region24: #{up_forward.5} parent=5 // pred_fallthru
      _
    %p138 = scmp.le.s32.totalorder 1, %s9
    %p139 = scmp.lt.s32.totalorder %s9, 3
    %p140 = pnand %p138, %p139
    %p141 = pneg %p140
    // Predicated region
    $region29: #{up_forward.5} parent=5 // pred_check
      _
    $region30: #{up_forward.5} parent=5 // pred_check_branch
      %143 = sbr.rel (%p140) target = $region32
    $region31: #{up_forward.5} parent=5 // pred_region
      %s144 = ssub.s32 %s9, 1
      %s145 = smul.u32 8, %s14
      %p146 = scmp.lt.s32.totalorder %s145, 15
      %s147 = scalar_select %p146, %s145, 15
      %s148 = smul.addr %s147, 2
      %s149 = smul.addr %s148, 8
      %s150 = scalar_lea.vmem %s0, %s149
      %p151 = pneg %p35
      %p152 = pneg %p32
      %p153 = pneg %p56
      %p154 = pneg %p53
      %p155 = pneg %p77
      %p156 = pneg %p74
      %p157 = pneg %p103
      %p158 = pneg %p100
      %s159 = smul.u32 8, %s14
      %p160 = scmp.lt.s32.totalorder %s159, 15
      %s161 = scalar_select %p160, %s159, 15
      %s162 = smul.addr %s161, 4
      %s163 = smul.addr %s162, 8
      %s164 = scalar_lea.vmem %s3, %s163
      %s165 = smul.u32 8, %s14
      %p166 = scmp.lt.s32.totalorder %s165, 15
      %s167 = scalar_select %p166, %s165, 15
      %s168 = smul.addr %s167, 2
      %s169 = smul.addr %s168, 8
      %s170 = scalar_lea.vmem %s0, %s169
      %s171 = smul.u32 8, %s14
      %s172 = smul.u32 8, %s14
      %p173 = scmp.lt.s32.totalorder %s172, 15
      %s174 = scalar_select %p173, %s172, 15
      %s175 = smul.addr %s174, 4
      %s176 = smul.addr %s175, 8
      %s177 = scalar_lea.vmem %s3, %s176
      %s178 = smul.u32 8, %s14
      %v179 = vld [vmem:[%s170] sm:$0xff]
      %v180 = vld [vmem:[%s170 + $0x8] sm:$0xff]
      %v181 = vld [vmem:[%s170 + $0x10] sm:$0xff]
      %v182 = vld [vmem:[%s170 + $0x18] sm:$0xff]
      %v183 = vld [vmem:[%s170 + $0x20] sm:$0xff]
      %v184 = vld [vmem:[%s170 + $0x28] sm:$0xff]
      %v185 = vld [vmem:[%s170 + $0x30] sm:$0xff]
      %v186 = vld [vmem:[%s170 + $0x38] sm:$0xff]
      %v187 = vld [vmem:[%s170 + $0x40] sm:$0xff]
      %v188 = vld [vmem:[%s170 + $0x48] sm:$0xff]
      %v189 = vld [vmem:[%s170 + $0x50] sm:$0xff]
      %v190 = vld [vmem:[%s170 + $0x58] sm:$0xff]
      %v191 = vld [vmem:[%s170 + $0x60] sm:$0xff]
      %v192 = vld [vmem:[%s170 + $0x68] sm:$0xff]
      %v193 = vld [vmem:[%s170 + $0x70] sm:$0xff]
      %v194 = vld [vmem:[%s170 + $0x78] sm:$0xff]
      %v195 = vld [vmem:[%s2] sm:$0xff]
      %v196 = vld [vmem:[%s2 + $0x8] sm:$0xff]
      %vm197 = vcmask 130048
      %v199 = vsel %vm197, %v179, 0
      %v202 = vsel %vm197, %v180, 0
      %v205 = vsel %vm197, %v181, 0
      %v208 = vsel %vm197, %v182, 0
      %v211 = vsel %vm197, %v183, 0
      %v214 = vsel %vm197, %v184, 0
      %v217 = vsel %vm197, %v185, 0
      %v220 = vsel %vm197, %v186, 0
      %v223 = vsel %vm197, %v187, 0
      %v226 = vsel %vm197, %v188, 0
      %v229 = vsel %vm197, %v189, 0
      %v232 = vsel %vm197, %v190, 0
      %v235 = vsel %vm197, %v191, 0
      %v238 = vsel %vm197, %v192, 0
      %v241 = vsel %vm197, %v193, 0
      %v244 = vsel %vm197, %v194, 0
      %246 = vmatpush.msra.mxu0 0.0
      %247 = vmatpush.msra.mxu0 0.0
      %248 = vmatpush.msra.mxu0 0.0
      %249 = vmatpush.msra.mxu0 0.0
      %250 = vmatpush.msra.mxu0 0.0
      %251 = vmatpush.msra.mxu0 0.0
      %252 = vmatpush.msra.mxu0 0.0
      %253 = vmatpush.msra.mxu0 0.0
      %254 = vmatpush.msra.mxu0 0.0
      %255 = vmatpush.msra.mxu0 0.0
      %256 = vmatpush.msra.mxu0 0.0
      %257 = vmatpush.msra.mxu0 0.0
      %258 = vmatpush.msra.mxu0 0.0
      %259 = vmatpush.msra.mxu0 0.0
      %260 = vmatpush.msra.mxu0 %v196
      %261 = vmatpush.msra.mxu0 %v195
      %262 = vmatmul.f32.gmra.mxu0 %v199
      %v263 = vpop.f32.mrf.mxu0
      %v264 = vadd.f32 0.0, %v263
      %265 = vmatmul.f32.gmra.mxu0 %v202
      %v266 = vpop.f32.mrf.mxu0
      %v267 = vadd.f32 0.0, %v266
      %268 = vmatmul.f32.gmra.mxu0 %v205
      %v269 = vpop.f32.mrf.mxu0
      %v270 = vadd.f32 0.0, %v269
      %271 = vmatmul.f32.gmra.mxu0 %v208
      %v272 = vpop.f32.mrf.mxu0
      %v273 = vadd.f32 0.0, %v272
      %274 = vmatmul.f32.gmra.mxu0 %v211
      %v275 = vpop.f32.mrf.mxu0
      %v276 = vadd.f32 0.0, %v275
      %277 = vmatmul.f32.gmra.mxu0 %v214
      %v278 = vpop.f32.mrf.mxu0
      %v279 = vadd.f32 0.0, %v278
      %280 = vmatmul.f32.gmra.mxu0 %v217
      %v281 = vpop.f32.mrf.mxu0
      %v282 = vadd.f32 0.0, %v281
      %283 = vmatmul.f32.gmra.mxu0 %v220
      %v284 = vpop.f32.mrf.mxu0
      %v285 = vadd.f32 0.0, %v284
      %286 = vmatmul.f32.gmra.mxu0 %v223
      %v287 = vpop.f32.mrf.mxu0
      %v288 = vadd.f32 0.0, %v287
      %289 = vmatmul.f32.gmra.mxu0 %v226
      %v290 = vpop.f32.mrf.mxu0
      %v291 = vadd.f32 0.0, %v290
      %292 = vmatmul.f32.gmra.mxu0 %v229
      %v293 = vpop.f32.mrf.mxu0
      %v294 = vadd.f32 0.0, %v293
      %295 = vmatmul.f32.gmra.mxu0 %v232
      %v296 = vpop.f32.mrf.mxu0
      %v297 = vadd.f32 0.0, %v296
      %298 = vmatmul.f32.gmra.mxu0 %v235
      %v299 = vpop.f32.mrf.mxu0
      %v300 = vadd.f32 0.0, %v299
      %301 = vmatmul.f32.gmra.mxu0 %v238
      %v302 = vpop.f32.mrf.mxu0
      %v303 = vadd.f32 0.0, %v302
      %304 = vmatmul.f32.gmra.mxu0 %v241
      %v305 = vpop.f32.mrf.mxu0
      %v306 = vadd.f32 0.0, %v305
      %307 = vmatmul.f32.gmra.mxu0 %v244
      %v308 = vpop.f32.mrf.mxu0
      %v309 = vadd.f32 0.0, %v308
      %310 = vdwg.mxu0
      %v311 = vld [vmem:[%s1] sm:$0xff]
      %v312 = vld [vmem:[%s1 + $0x8] sm:$0xff]
      %v313 = vld [vmem:[%s1 + $0x10] sm:$0xff]
      %v314 = vld [vmem:[%s1 + $0x18] sm:$0xff]
      %v316 = vsel %vm197, %v311, 0
      %v319 = vsel %vm197, %v312, 0
      %v322 = vsel %vm197, %v313, 0
      %v325 = vsel %vm197, %v314, 0
      %327 = vmatpush.msra.mxu0 0.0
      %328 = vmatpush.msra.mxu0 0.0
      %329 = vmatpush.msra.mxu0 0.0
      %330 = vmatpush.msra.mxu0 0.0
      %331 = vmatpush.msra.mxu0 0.0
      %332 = vmatpush.msra.mxu0 0.0
      %333 = vmatpush.msra.mxu0 0.0
      %334 = vmatpush.msra.mxu0 0.0
      %335 = vmatpush.msra.mxu0 0.0
      %336 = vmatpush.msra.mxu0 0.0
      %337 = vmatpush.msra.mxu0 0.0
      %338 = vmatpush.msra.mxu0 0.0
      %339 = vmatpush.msra.mxu0 0.0
      %340 = vmatpush.msra.mxu0 0.0
      %341 = vmatpush.msra.mxu0 %v267
      %342 = vmatpush.msra.mxu0 %v264
      %343 = vmatmul.f32.gmra.mxu0 %v316
      %v344 = vpop.f32.mrf.mxu0
      %v345 = vadd.f32 0.0, %v344
      %346 = vmatmul.f32.gmra.mxu0 %v319
      %v347 = vpop.f32.mrf.mxu0
      %v348 = vadd.f32 0.0, %v347
      %349 = vmatmul.f32.gmra.mxu0 %v322
      %v350 = vpop.f32.mrf.mxu0
      %v351 = vadd.f32 0.0, %v350
      %352 = vmatmul.f32.gmra.mxu0 %v325
      %v353 = vpop.f32.mrf.mxu0
      %v354 = vadd.f32 0.0, %v353
      %355 = vdwg.mxu0
      %356 = vmatpush.msra.mxu0 0.0
      %357 = vmatpush.msra.mxu0 0.0
      %358 = vmatpush.msra.mxu0 0.0
      %359 = vmatpush.msra.mxu0 0.0
      %360 = vmatpush.msra.mxu0 0.0
      %361 = vmatpush.msra.mxu0 0.0
      %362 = vmatpush.msra.mxu0 0.0
      %363 = vmatpush.msra.mxu0 0.0
      %364 = vmatpush.msra.mxu0 0.0
      %365 = vmatpush.msra.mxu0 0.0
      %366 = vmatpush.msra.mxu0 0.0
      %367 = vmatpush.msra.mxu0 0.0
      %368 = vmatpush.msra.mxu0 0.0
      %369 = vmatpush.msra.mxu0 0.0
      %370 = vmatpush.msra.mxu0 %v273
      %371 = vmatpush.msra.mxu0 %v270
      %372 = vmatmul.f32.gmra.mxu0 %v316
      %v373 = vpop.f32.mrf.mxu0
      %v374 = vadd.f32 0.0, %v373
      %375 = vmatmul.f32.gmra.mxu0 %v319
      %v376 = vpop.f32.mrf.mxu0
      %v377 = vadd.f32 0.0, %v376
      %378 = vmatmul.f32.gmra.mxu0 %v322
      %v379 = vpop.f32.mrf.mxu0
      %v380 = vadd.f32 0.0, %v379
      %381 = vmatmul.f32.gmra.mxu0 %v325
      %v382 = vpop.f32.mrf.mxu0
      %v383 = vadd.f32 0.0, %v382
      %384 = vdwg.mxu0
      %385 = vmatpush.msra.mxu0 0.0
      %386 = vmatpush.msra.mxu0 0.0
      %387 = vmatpush.msra.mxu0 0.0
      %388 = vmatpush.msra.mxu0 0.0
      %389 = vmatpush.msra.mxu0 0.0
      %390 = vmatpush.msra.mxu0 0.0
      %391 = vmatpush.msra.mxu0 0.0
      %392 = vmatpush.msra.mxu0 0.0
      %393 = vmatpush.msra.mxu0 0.0
      %394 = vmatpush.msra.mxu0 0.0
      %395 = vmatpush.msra.mxu0 0.0
      %396 = vmatpush.msra.mxu0 0.0
      %397 = vmatpush.msra.mxu0 0.0
      %398 = vmatpush.msra.mxu0 0.0
      %399 = vmatpush.msra.mxu0 %v279
      %400 = vmatpush.msra.mxu0 %v276
      %401 = vmatmul.f32.gmra.mxu0 %v316
      %v402 = vpop.f32.mrf.mxu0
      %v403 = vadd.f32 0.0, %v402
      %404 = vmatmul.f32.gmra.mxu0 %v319
      %v405 = vpop.f32.mrf.mxu0
      %v406 = vadd.f32 0.0, %v405
      %407 = vmatmul.f32.gmra.mxu0 %v322
      %v408 = vpop.f32.mrf.mxu0
      %v409 = vadd.f32 0.0, %v408
      %410 = vmatmul.f32.gmra.mxu0 %v325
      %v411 = vpop.f32.mrf.mxu0
      %v412 = vadd.f32 0.0, %v411
      %413 = vdwg.mxu0
      %414 = vmatpush.msra.mxu0 0.0
      %415 = vmatpush.msra.mxu0 0.0
      %416 = vmatpush.msra.mxu0 0.0
      %417 = vmatpush.msra.mxu0 0.0
      %418 = vmatpush.msra.mxu0 0.0
      %419 = vmatpush.msra.mxu0 0.0
      %420 = vmatpush.msra.mxu0 0.0
      %421 = vmatpush.msra.mxu0 0.0
      %422 = vmatpush.msra.mxu0 0.0
      %423 = vmatpush.msra.mxu0 0.0
      %424 = vmatpush.msra.mxu0 0.0
      %425 = vmatpush.msra.mxu0 0.0
      %426 = vmatpush.msra.mxu0 0.0
      %427 = vmatpush.msra.mxu0 0.0
      %428 = vmatpush.msra.mxu0 %v285
      %429 = vmatpush.msra.mxu0 %v282
      %430 = vmatmul.f32.gmra.mxu0 %v316
      %v431 = vpop.f32.mrf.mxu0
      %v432 = vadd.f32 0.0, %v431
      %433 = vmatmul.f32.gmra.mxu0 %v319
      %v434 = vpop.f32.mrf.mxu0
      %v435 = vadd.f32 0.0, %v434
      %436 = vmatmul.f32.gmra.mxu0 %v322
      %v437 = vpop.f32.mrf.mxu0
      %v438 = vadd.f32 0.0, %v437
      %439 = vmatmul.f32.gmra.mxu0 %v325
      %v440 = vpop.f32.mrf.mxu0
      %v441 = vadd.f32 0.0, %v440
      %442 = vdwg.mxu0
      %443 = vmatpush.msra.mxu0 0.0
      %444 = vmatpush.msra.mxu0 0.0
      %445 = vmatpush.msra.mxu0 0.0
      %446 = vmatpush.msra.mxu0 0.0
      %447 = vmatpush.msra.mxu0 0.0
      %448 = vmatpush.msra.mxu0 0.0
      %449 = vmatpush.msra.mxu0 0.0
      %450 = vmatpush.msra.mxu0 0.0
      %451 = vmatpush.msra.mxu0 0.0
      %452 = vmatpush.msra.mxu0 0.0
      %453 = vmatpush.msra.mxu0 0.0
      %454 = vmatpush.msra.mxu0 0.0
      %455 = vmatpush.msra.mxu0 0.0
      %456 = vmatpush.msra.mxu0 0.0
      %457 = vmatpush.msra.mxu0 %v291
      %458 = vmatpush.msra.mxu0 %v288
      %459 = vmatmul.f32.gmra.mxu0 %v316
      %v460 = vpop.f32.mrf.mxu0
      %v461 = vadd.f32 0.0, %v460
      %462 = vmatmul.f32.gmra.mxu0 %v319
      %v463 = vpop.f32.mrf.mxu0
      %v464 = vadd.f32 0.0, %v463
      %465 = vmatmul.f32.gmra.mxu0 %v322
      %v466 = vpop.f32.mrf.mxu0
      %v467 = vadd.f32 0.0, %v466
      %468 = vmatmul.f32.gmra.mxu0 %v325
      %v469 = vpop.f32.mrf.mxu0
      %v470 = vadd.f32 0.0, %v469
      %471 = vdwg.mxu0
      %472 = vmatpush.msra.mxu0 0.0
      %473 = vmatpush.msra.mxu0 0.0
      %474 = vmatpush.msra.mxu0 0.0
      %475 = vmatpush.msra.mxu0 0.0
      %476 = vmatpush.msra.mxu0 0.0
      %477 = vmatpush.msra.mxu0 0.0
      %478 = vmatpush.msra.mxu0 0.0
      %479 = vmatpush.msra.mxu0 0.0
      %480 = vmatpush.msra.mxu0 0.0
      %481 = vmatpush.msra.mxu0 0.0
      %482 = vmatpush.msra.mxu0 0.0
      %483 = vmatpush.msra.mxu0 0.0
      %484 = vmatpush.msra.mxu0 0.0
      %485 = vmatpush.msra.mxu0 0.0
      %486 = vmatpush.msra.mxu0 %v297
      %487 = vmatpush.msra.mxu0 %v294
      %488 = vmatmul.f32.gmra.mxu0 %v316
      %v489 = vpop.f32.mrf.mxu0
      %v490 = vadd.f32 0.0, %v489
      %491 = vmatmul.f32.gmra.mxu0 %v319
      %v492 = vpop.f32.mrf.mxu0
      %v493 = vadd.f32 0.0, %v492
      %494 = vmatmul.f32.gmra.mxu0 %v322
      %v495 = vpop.f32.mrf.mxu0
      %v496 = vadd.f32 0.0, %v495
      %497 = vmatmul.f32.gmra.mxu0 %v325
      %v498 = vpop.f32.mrf.mxu0
      %v499 = vadd.f32 0.0, %v498
      %500 = vdwg.mxu0
      %501 = vmatpush.msra.mxu0 0.0
      %502 = vmatpush.msra.mxu0 0.0
      %503 = vmatpush.msra.mxu0 0.0
      %504 = vmatpush.msra.mxu0 0.0
      %505 = vmatpush.msra.mxu0 0.0
      %506 = vmatpush.msra.mxu0 0.0
      %507 = vmatpush.msra.mxu0 0.0
      %508 = vmatpush.msra.mxu0 0.0
      %509 = vmatpush.msra.mxu0 0.0
      %510 = vmatpush.msra.mxu0 0.0
      %511 = vmatpush.msra.mxu0 0.0
      %512 = vmatpush.msra.mxu0 0.0
      %513 = vmatpush.msra.mxu0 0.0
      %514 = vmatpush.msra.mxu0 0.0
      %515 = vmatpush.msra.mxu0 %v303
      %516 = vmatpush.msra.mxu0 %v300
      %517 = vmatmul.f32.gmra.mxu0 %v316
      %v518 = vpop.f32.mrf.mxu0
      %v519 = vadd.f32 0.0, %v518
      %520 = vmatmul.f32.gmra.mxu0 %v319
      %v521 = vpop.f32.mrf.mxu0
      %v522 = vadd.f32 0.0, %v521
      %523 = vmatmul.f32.gmra.mxu0 %v322
      %v524 = vpop.f32.mrf.mxu0
      %v525 = vadd.f32 0.0, %v524
      %526 = vmatmul.f32.gmra.mxu0 %v325
      %v527 = vpop.f32.mrf.mxu0
      %v528 = vadd.f32 0.0, %v527
      %529 = vdwg.mxu0
      %530 = vmatpush.msra.mxu0 0.0
      %531 = vmatpush.msra.mxu0 0.0
      %532 = vmatpush.msra.mxu0 0.0
      %533 = vmatpush.msra.mxu0 0.0
      %534 = vmatpush.msra.mxu0 0.0
      %535 = vmatpush.msra.mxu0 0.0
      %536 = vmatpush.msra.mxu0 0.0
      %537 = vmatpush.msra.mxu0 0.0
      %538 = vmatpush.msra.mxu0 0.0
      %539 = vmatpush.msra.mxu0 0.0
      %540 = vmatpush.msra.mxu0 0.0
      %541 = vmatpush.msra.mxu0 0.0
      %542 = vmatpush.msra.mxu0 0.0
      %543 = vmatpush.msra.mxu0 0.0
      %544 = vmatpush.msra.mxu0 %v309
      %545 = vmatpush.msra.mxu0 %v306
      %546 = vmatmul.f32.gmra.mxu0 %v316
      %v547 = vpop.f32.mrf.mxu0
      %v548 = vadd.f32 0.0, %v547
      %549 = vmatmul.f32.gmra.mxu0 %v319
      %v550 = vpop.f32.mrf.mxu0
      %v551 = vadd.f32 0.0, %v550
      %552 = vmatmul.f32.gmra.mxu0 %v322
      %v553 = vpop.f32.mrf.mxu0
      %v554 = vadd.f32 0.0, %v553
      %555 = vmatmul.f32.gmra.mxu0 %v325
      %v556 = vpop.f32.mrf.mxu0
      %v557 = vadd.f32 0.0, %v556
      %558 = vdwg.mxu0
      %vm559 = vcmask 261120
      %560 = vst.msk [vmem:[%s177] sm:$0xff] %vm559, %v345
      %561 = vst.msk [vmem:[%s177 + $0x8] sm:$0xff] %vm559, %v348
      %562 = vst.msk [vmem:[%s177 + $0x10] sm:$0xff] %vm559, %v351
      %563 = vst.msk [vmem:[%s177 + $0x18] sm:$0xff] %vm559, %v354
      %564 = vst.msk [vmem:[%s177 + $0x20] sm:$0xff] %vm559, %v374
      %565 = vst.msk [vmem:[%s177 + $0x28] sm:$0xff] %vm559, %v377
      %566 = vst.msk [vmem:[%s177 + $0x30] sm:$0xff] %vm559, %v380
      %567 = vst.msk [vmem:[%s177 + $0x38] sm:$0xff] %vm559, %v383
      %568 = vst.msk [vmem:[%s177 + $0x40] sm:$0xff] %vm559, %v403
      %569 = vst.msk [vmem:[%s177 + $0x48] sm:$0xff] %vm559, %v406
      %570 = vst.msk [vmem:[%s177 + $0x50] sm:$0xff] %vm559, %v409
      %571 = vst.msk [vmem:[%s177 + $0x58] sm:$0xff] %vm559, %v412
      %572 = vst.msk [vmem:[%s177 + $0x60] sm:$0xff] %vm559, %v432
      %573 = vst.msk [vmem:[%s177 + $0x68] sm:$0xff] %vm559, %v435
      %574 = vst.msk [vmem:[%s177 + $0x70] sm:$0xff] %vm559, %v438
      %575 = vst.msk [vmem:[%s177 + $0x78] sm:$0xff] %vm559, %v441
      %576 = vst.msk [vmem:[%s177 + $0x80] sm:$0xff] %vm559, %v461
      %577 = vst.msk [vmem:[%s177 + $0x88] sm:$0xff] %vm559, %v464
      %578 = vst.msk [vmem:[%s177 + $0x90] sm:$0xff] %vm559, %v467
      %579 = vst.msk [vmem:[%s177 + $0x98] sm:$0xff] %vm559, %v470
      %580 = vst.msk [vmem:[%s177 + $0xa0] sm:$0xff] %vm559, %v490
      %581 = vst.msk [vmem:[%s177 + $0xa8] sm:$0xff] %vm559, %v493
      %582 = vst.msk [vmem:[%s177 + $0xb0] sm:$0xff] %vm559, %v496
      %583 = vst.msk [vmem:[%s177 + $0xb8] sm:$0xff] %vm559, %v499
      %584 = vst.msk [vmem:[%s177 + $0xc0] sm:$0xff] %vm559, %v519
      %585 = vst.msk [vmem:[%s177 + $0xc8] sm:$0xff] %vm559, %v522
      %586 = vst.msk [vmem:[%s177 + $0xd0] sm:$0xff] %vm559, %v525
      %587 = vst.msk [vmem:[%s177 + $0xd8] sm:$0xff] %vm559, %v528
      %588 = vst.msk [vmem:[%s177 + $0xe0] sm:$0xff] %vm559, %v548
      %589 = vst.msk [vmem:[%s177 + $0xe8] sm:$0xff] %vm559, %v551
      %590 = vst.msk [vmem:[%s177 + $0xf0] sm:$0xff] %vm559, %v554
      %591 = vst.msk [vmem:[%s177 + $0xf8] sm:$0xff] %vm559, %v557
      %s592 = smul.u32 8, %s14
      %p593 = scmp.lt.s32.totalorder %s592, 15
      %s594 = scalar_select %p593, %s592, 15
      %s595 = smul.addr %s594, 4
      %s596 = smul.addr %s595, 8
      %s597 = scalar_lea.vmem %s3, %s596
      // Predicated region
      $region33: #{up_forward.5} parent=31 // pred_check
        %p598 = pneg %p100
      $region34: #{up_forward.5} parent=31 // pred_check_branch
        %600 = sbr.rel (%p598) target = $region36
      $region35: #{up_forward.5} parent=31 // pred_region
        %s601 = smul.u32 8, %s14
      $region36: #{up_forward.5} parent=31 // pred_fallthru
        _
    $region32: #{up_forward.5} parent=5 // pred_fallthru
      _
    %p602 = scmp.le.s32.totalorder 2, %s9
    // Predicated region
    $region37: #{up_forward.5} parent=5 // pred_check
      %p603 = pneg %p602
    $region38: #{up_forward.5} parent=5 // pred_check_branch
      %605 = sbr.rel (%p603) target = $region40
    $region39: #{up_forward.5} parent=5 // pred_region
      %s606 = ssub.s32 %s9, 2
      // Predicated region
      $region41: #{up_forward.5} parent=39 // pred_check
        %p607 = pneg %p106
      $region42: #{up_forward.5} parent=39 // pred_check_branch
        %609 = sbr.rel (%p607) target = $region44
      $region43: #{up_forward.5} parent=39 // pred_region
        %s610 = smul.u32 8, %s15
        %p611 = scmp.lt.s32.totalorder %s610, 15
        %s612 = scalar_select %p611, %s610, 15
        %s613 = smul.addr %s612, 4
        %s614 = smul.addr %s613, 8
        %s615 = scalar_lea.vmem %s3, %s614
      $region44: #{up_forward.5} parent=39 // pred_fallthru
        _
    $region40: #{up_forward.5} parent=5 // pred_fallthru
      _
  $region6: #{up_forward.5} parent=0 // loop_footer
    %s13 = sadd.s32 1, %s9
  $region7: #{up_forward.5} parent=0 // loop_footer_branch
    %8 = sbr.rel target = $region3
  $region8: #{up_forward.5} parent=0 // loop_exit
    _

// kernel: up_forward.7
$region0: #{up_forward.7}
  #allocation0 [shape = 'u32[]', space=smem, size = 0x4, offset = 0x4, fixed_abs, tag = 'smem constant byte address 0x4 - core index']
  #allocation1 [shape = 'u32[72,128]{1,0:T(1,128)}', space=vmem, size = 0x9000, scoped, tag = 'internal scratch']
  %s0 = inlined_call_operand.vmem [shape: f32[8,32,32], index: 0, kind: input, shape index: {}]
  %s1 = inlined_call_operand.vmem [shape: f32[64,32], index: 1, kind: input, shape index: {}]
  %s2 = inlined_call_operand.vmem [shape: f32[32,64], index: 2, kind: input, shape index: {}]
  %s3 = inlined_call_operand.hbm [shape: f32[8,64,64], index: 3, kind: output, shape index: {}]
  %s4 = sld [smem:[#allocation0]]
  $region45: #{up_forward.7} parent=0
    _
  %s6 = ssub.s32 1, %s4
  %s7 = scalar_select 0, %s6, %s4
  $region1: #{up_forward.7} parent=0
    #allocation2 [shape = 'u8[262144]{0}', space=vmem, size = 0x40000, scoped, tag = 'output window, operand 0']
    #allocation3 [shape = 's32[2]{0}', space=sflag, size = 0x8, scoped, tag = 'scoped memory for up_forward.7']
    %8 = vsyncpa [#allocation3], 0
    %s9 = scalar_lea.sflag [#allocation3], 1
    %10 = vsyncpa %s9, 0
    loop: start=0, step=1, limit=4
    $region2: #{up_forward.7} parent=1 // loop_pre_header
      _
    $region3: #{up_forward.7} parent=1 // loop_header
      %s12 = sphi 0, %s16
      %p13 = scmp.ge.s32.totalorder %s12, 4
      %s22 = sphi 0, %s24
      %s25 = sphi 0, %s22
      %s26 = sphi 0, %s25
      %s42 = sphi 0, %s26
      %s46 = sphi 0, %s46
      %s48 = sphi 0, %s46
      %s49 = sphi 0, %s48
      %s63 = sphi 0, %s49
      %s67 = sphi 0, %s67
      %s69 = sphi 0, %s67
      %s70 = sphi 0, %s69
      %s84 = sphi 0, %s70
      %s90 = sphi 0, %s92
      %s93 = sphi 0, %s90
      %s94 = sphi 0, %s93
      %s110 = sphi 0, %s94
    $region4: #{up_forward.7} parent=1 // loop_header_branch
      %15 = sbr.rel (%p13) target = $region8
    $region5: #{up_forward.7} parent=1 // loop_body
      %s17 = ssub.s32 %s12, 1
      %s18 = ssub.s32 %s12, 2
      %s19 = sadd.s32 %s12, 1
      %s20 = ssub.s32 %s12, %s19
      %p21 = scmp.eq.s32.totalorder %s20, 0
      %s23 = sadd.s32 %s22, 1
      %s24 = scalar_select %p21, %s22, %s23
      %p27 = pneg %p21
      %p28 = scmp.eq.s32.totalorder %s12, 1
      %p29 = por %p27, %p28
      %p30 = scmp.ne.s32.totalorder %s22, %s25
      %p31 = scmp.eq.s32.totalorder %s12, 0
      %p32 = por %p30, %p31
      %p33 = scmp.ne.s32.totalorder %s22, %s25
      %p34 = scmp.eq.s32.totalorder %s17, 1
      %p35 = por %p33, %p34
      %p36 = scmp.ne.s32.totalorder %s25, %s26
      %p37 = scmp.eq.s32.totalorder %s17, 0
      %p38 = por %p36, %p37
      %p39 = scmp.ne.s32.totalorder %s25, %s26
      %p40 = scmp.eq.s32.totalorder %s18, 1
      %p41 = por %p39, %p40
      %p43 = scmp.ne.s32.totalorder %s26, %s42
      %p44 = scmp.eq.s32.totalorder %s18, 0
      %p45 = por %p43, %p44
      %s47 = sadd.s32 %s46, 1
      %p50 = scmp.eq.s32.totalorder %s12, 1
      %p51 = scmp.ne.s32.totalorder %s46, %s48
      %p52 = scmp.eq.s32.totalorder %s12, 0
      %p53 = por %p51, %p52
      %p54 = scmp.ne.s32.totalorder %s46, %s48
      %p55 = scmp.eq.s32.totalorder %s17, 1
      %p56 = por %p54, %p55
      %p57 = scmp.ne.s32.totalorder %s48, %s49
      %p58 = scmp.eq.s32.totalorder %s17, 0
      %p59 = por %p57, %p58
      %p60 = scmp.ne.s32.totalorder %s48, %s49
      %p61 = scmp.eq.s32.totalorder %s18, 1
      %p62 = por %p60, %p61
      %p64 = scmp.ne.s32.totalorder %s49, %s63
      %p65 = scmp.eq.s32.totalorder %s18, 0
      %p66 = por %p64, %p65
      %s68 = sadd.s32 %s67, 1
      %p71 = scmp.eq.s32.totalorder %s12, 1
      %p72 = scmp.ne.s32.totalorder %s67, %s69
      %p73 = scmp.eq.s32.totalorder %s12, 0
      %p74 = por %p72, %p73
      %p75 = scmp.ne.s32.totalorder %s67, %s69
      %p76 = scmp.eq.s32.totalorder %s17, 1
      %p77 = por %p75, %p76
      %p78 = scmp.ne.s32.totalorder %s69, %s70
      %p79 = scmp.eq.s32.totalorder %s17, 0
      %p80 = por %p78, %p79
      %p81 = scmp.ne.s32.totalorder %s69, %s70
      %p82 = scmp.eq.s32.totalorder %s18, 1
      %p83 = por %p81, %p82
      %p85 = scmp.ne.s32.totalorder %s70, %s84
      %p86 = scmp.eq.s32.totalorder %s18, 0
      %p87 = por %p85, %p86
      %s88 = ssub.s32 %s12, %s19
      %p89 = scmp.eq.s32.totalorder %s88, 0
      %s91 = sadd.s32 %s90, 1
      %s92 = scalar_select %p89, %s90, %s91
      %p95 = pneg %p89
      %p96 = scmp.eq.s32.totalorder %s12, 1
      %p97 = por %p95, %p96
      %p98 = scmp.ne.s32.totalorder %s90, %s93
      %p99 = scmp.eq.s32.totalorder %s12, 0
      %p100 = por %p98, %p99
      %p101 = scmp.ne.s32.totalorder %s90, %s93
      %p102 = scmp.eq.s32.totalorder %s17, 1
      %p103 = por %p101, %p102
      %p104 = scmp.ne.s32.totalorder %s93, %s94
      %p105 = scmp.eq.s32.totalorder %s17, 0
      %p106 = por %p104, %p105
      %p107 = scmp.ne.s32.totalorder %s93, %s94
      %p108 = scmp.eq.s32.totalorder %s18, 1
      %p109 = por %p107, %p108
      %p111 = scmp.ne.s32.totalorder %s94, %s110
      %p112 = scmp.eq.s32.totalorder %s18, 0
      %p113 = por %p111, %p112
      %p114 = scmp.le.s32.totalorder 1, %s12
      %p115 = scmp.lt.s32.totalorder %s12, 3
      %p116 = pnand %p114, %p115
      %p117 = pneg %p116
      // Predicated region
      $region9: #{up_forward.7} parent=5 // pred_check
        _
      $region10: #{up_forward.7} parent=5 // pred_check_branch
        %119 = sbr.rel (%p116) target = $region12
      $region11: #{up_forward.7} parent=5 // pred_region
        %s120 = ssub.s32 %s12, 1
        // Predicated region
        $region13: #{up_forward.7} parent=11 // pred_check
          %p121 = pneg %p59
        $region14: #{up_forward.7} parent=11 // pred_check_branch
          %123 = sbr.rel (%p121) target = $region16
        $region15: #{up_forward.7} parent=11 // pred_region
          _
        $region16: #{up_forward.7} parent=11 // pred_fallthru
          _
        // Predicated region
        $region17: #{up_forward.7} parent=11 // pred_check
          %p124 = pneg %p80
        $region18: #{up_forward.7} parent=11 // pred_check_branch
          %126 = sbr.rel (%p124) target = $region20
        $region19: #{up_forward.7} parent=11 // pred_region
          _
        $region20: #{up_forward.7} parent=11 // pred_fallthru
          _
      $region12: #{up_forward.7} parent=5 // pred_fallthru
        _
      %p127 = scmp.lt.s32.totalorder %s12, 2
      // Predicated region
      $region21: #{up_forward.7} parent=5 // pred_check
        %p128 = pneg %p127
      $region22: #{up_forward.7} parent=5 // pred_check_branch
        %130 = sbr.rel (%p128) target = $region24
      $region23: #{up_forward.7} parent=5 // pred_region
        // Predicated region
        $region25: #{up_forward.7} parent=23 // pred_check
          %p131 = pneg %p32
        $region26: #{up_forward.7} parent=23 // pred_check_branch
          %133 = sbr.rel (%p131) target = $region28
        $region27: #{up_forward.7} parent=23 // pred_region
          %s134 = smul.u32 4, %s12
          %p135 = scmp.lt.s32.totalorder %s134, 7
          %s136 = scalar_select %p135, %s134, 7
          %s137 = smul.addr %s136, 4
          %s138 = smul.addr %s137, 8
          %s139 = scalar_lea.vmem %s0, %s138
          %s140 = smul.u32 4, %s12
        $region28: #{up_forward.7} parent=23 // pred_fallthru
          _
      $region24: #{up_forward.7} parent=5 // pred_fallthru
        _
      %p141 = scmp.le.s32.totalorder 1, %s12
      %p142 = scmp.lt.s32.totalorder %s12, 3
      %p143 = pnand %p141, %p142
      %p144 = pneg %p143
      // Predicated region
      $region29: #{up_forward.7} parent=5 // pred_check
        _
      $region30: #{up_forward.7} parent=5 // pred_check_branch
        %146 = sbr.rel (%p143) target = $region32
      $region31: #{up_forward.7} parent=5 // pred_region
        %s147 = ssub.s32 %s12, 1
        %s148 = smul.u32 4, %s17
        %p149 = scmp.lt.s32.totalorder %s148, 7
        %s150 = scalar_select %p149, %s148, 7
        %s151 = smul.addr %s150, 4
        %s152 = smul.addr %s151, 8
        %s153 = scalar_lea.vmem %s0, %s152
        %p154 = pneg %p38
        %p155 = pneg %p35
        %p156 = pneg %p59
        %p157 = pneg %p56
        %p158 = pneg %p80
        %p159 = pneg %p77
        %p160 = pneg %p106
        %p161 = pneg %p103
        %s162 = sand.u32 %s93, 1
        %s163 = scalar_lea.sflag [#allocation3], %s162
        %s164 = sand.u32 %s93, 1
        %s165 = smul.addr %s164, 256
        %s166 = scalar_lea.vmem [#allocation2], %s165
        %s167 = smul.u32 4, %s17
        %p168 = scmp.lt.s32.totalorder %s167, 7
        %s169 = scalar_select %p168, %s167, 7
        %s170 = smul.addr %s169, 4
        %s171 = smul.addr %s170, 8
        %s172 = scalar_lea.vmem %s0, %s171
        %s173 = smul.u32 4, %s17
        %s174 = smul.u32 4, %s17
        %v175 = vld [vmem:[%s172] sm:$0xff]
        %v176 = vld [vmem:[%s172 + $0x8] sm:$0xff]
        %v177 = vld [vmem:[%s172 + $0x10] sm:$0xff]
        %v178 = vld [vmem:[%s172 + $0x18] sm:$0xff]
        %v179 = vld [vmem:[%s172 + $0x20] sm:$0xff]
        %v180 = vld [vmem:[%s172 + $0x28] sm:$0xff]
        %v181 = vld [vmem:[%s172 + $0x30] sm:$0xff]
        %v182 = vld [vmem:[%s172 + $0x38] sm:$0xff]
        %v183 = vld [vmem:[%s172 + $0x40] sm:$0xff]
        %v184 = vld [vmem:[%s172 + $0x48] sm:$0xff]
        %v185 = vld [vmem:[%s172 + $0x50] sm:$0xff]
        %v186 = vld [vmem:[%s172 + $0x58] sm:$0xff]
        %v187 = vld [vmem:[%s172 + $0x60] sm:$0xff]
        %v188 = vld [vmem:[%s172 + $0x68] sm:$0xff]
        %v189 = vld [vmem:[%s172 + $0x70] sm:$0xff]
        %v190 = vld [vmem:[%s172 + $0x78] sm:$0xff]
        %v191 = vld [vmem:[%s2] sm:$0xff]
        %v192 = vld [vmem:[%s2 + $0x8] sm:$0xff]
        %v193 = vld [vmem:[%s2 + $0x10] sm:$0xff]
        %v194 = vld [vmem:[%s2 + $0x18] sm:$0xff]
        %vm195 = vcmask 261120
        %v197 = vsel %vm195, %v175, 0
        %v200 = vsel %vm195, %v176, 0
        %v203 = vsel %vm195, %v177, 0
        %v206 = vsel %vm195, %v178, 0
        %v209 = vsel %vm195, %v179, 0
        %v212 = vsel %vm195, %v180, 0
        %v215 = vsel %vm195, %v181, 0
        %v218 = vsel %vm195, %v182, 0
        %v221 = vsel %vm195, %v183, 0
        %v224 = vsel %vm195, %v184, 0
        %v227 = vsel %vm195, %v185, 0
        %v230 = vsel %vm195, %v186, 0
        %v233 = vsel %vm195, %v187, 0
        %v236 = vsel %vm195, %v188, 0
        %v239 = vsel %vm195, %v189, 0
        %v242 = vsel %vm195, %v190, 0
        %244 = vmatpush.msra.mxu0 0.0
        %245 = vmatpush.msra.mxu0 0.0
        %246 = vmatpush.msra.mxu0 0.0
        %247 = vmatpush.msra.mxu0 0.0
        %248 = vmatpush.msra.mxu0 0.0
        %249 = vmatpush.msra.mxu0 0.0
        %250 = vmatpush.msra.mxu0 0.0
        %251 = vmatpush.msra.mxu0 0.0
        %252 = vmatpush.msra.mxu0 0.0
        %253 = vmatpush.msra.mxu0 0.0
        %254 = vmatpush.msra.mxu0 0.0
        %255 = vmatpush.msra.mxu0 0.0
        %256 = vmatpush.msra.mxu0 %v194
        %257 = vmatpush.msra.mxu0 %v193
        %258 = vmatpush.msra.mxu0 %v192
        %259 = vmatpush.msra.mxu0 %v191
        %260 = vmatmul.f32.gmra.mxu0 %v197
        %v261 = vpop.f32.mrf.mxu0
        %v262 = vadd.f32 0.0, %v261
        %263 = vmatmul.f32.gmra.mxu0 %v200
        %v264 = vpop.f32.mrf.mxu0
        %v265 = vadd.f32 0.0, %v264
        %266 = vmatmul.f32.gmra.mxu0 %v203
        %v267 = vpop.f32.mrf.mxu0
        %v268 = vadd.f32 0.0, %v267
        %269 = vmatmul.f32.gmra.mxu0 %v206
        %v270 = vpop.f32.mrf.mxu0
        %v271 = vadd.f32 0.0, %v270
        %272 = vmatmul.f32.gmra.mxu0 %v209
        %v273 = vpop.f32.mrf.mxu0
        %v274 = vadd.f32 0.0, %v273
        %275 = vmatmul.f32.gmra.mxu0 %v212
        %v276 = vpop.f32.mrf.mxu0
        %v277 = vadd.f32 0.0, %v276
        %278 = vmatmul.f32.gmra.mxu0 %v215
        %v279 = vpop.f32.mrf.mxu0
        %v280 = vadd.f32 0.0, %v279
        %281 = vmatmul.f32.gmra.mxu0 %v218
        %v282 = vpop.f32.mrf.mxu0
        %v283 = vadd.f32 0.0, %v282
        %284 = vmatmul.f32.gmra.mxu0 %v221
        %v285 = vpop.f32.mrf.mxu0
        %v286 = vadd.f32 0.0, %v285
        %287 = vmatmul.f32.gmra.mxu0 %v224
        %v288 = vpop.f32.mrf.mxu0
        %v289 = vadd.f32 0.0, %v288
        %290 = vmatmul.f32.gmra.mxu0 %v227
        %v291 = vpop.f32.mrf.mxu0
        %v292 = vadd.f32 0.0, %v291
        %293 = vmatmul.f32.gmra.mxu0 %v230
        %v294 = vpop.f32.mrf.mxu0
        %v295 = vadd.f32 0.0, %v294
        %296 = vmatmul.f32.gmra.mxu0 %v233
        %v297 = vpop.f32.mrf.mxu0
        %v298 = vadd.f32 0.0, %v297
        %299 = vmatmul.f32.gmra.mxu0 %v236
        %v300 = vpop.f32.mrf.mxu0
        %v301 = vadd.f32 0.0, %v300
        %302 = vmatmul.f32.gmra.mxu0 %v239
        %v303 = vpop.f32.mrf.mxu0
        %v304 = vadd.f32 0.0, %v303
        %305 = vmatmul.f32.gmra.mxu0 %v242
        %v306 = vpop.f32.mrf.mxu0
        %v307 = vadd.f32 0.0, %v306
        %308 = vdwg.mxu0
        %v309 = vld [vmem:[%s1] sm:$0xff]
        %v310 = vld [vmem:[%s1 + $0x8] sm:$0xff]
        %v311 = vld [vmem:[%s1 + $0x10] sm:$0xff]
        %v312 = vld [vmem:[%s1 + $0x18] sm:$0xff]
        %v313 = vld [vmem:[%s1 + $0x20] sm:$0xff]
        %v314 = vld [vmem:[%s1 + $0x28] sm:$0xff]
        %v315 = vld [vmem:[%s1 + $0x30] sm:$0xff]
        %v316 = vld [vmem:[%s1 + $0x38] sm:$0xff]
        %v318 = vsel %vm195, %v309, 0
        %v321 = vsel %vm195, %v310, 0
        %v324 = vsel %vm195, %v311, 0
        %v327 = vsel %vm195, %v312, 0
        %v330 = vsel %vm195, %v313, 0
        %v333 = vsel %vm195, %v314, 0
        %v336 = vsel %vm195, %v315, 0
        %v339 = vsel %vm195, %v316, 0
        %341 = vmatpush.msra.mxu0 0.0
        %342 = vmatpush.msra.mxu0 0.0
        %343 = vmatpush.msra.mxu0 0.0
        %344 = vmatpush.msra.mxu0 0.0
        %345 = vmatpush.msra.mxu0 0.0
        %346 = vmatpush.msra.mxu0 0.0
        %347 = vmatpush.msra.mxu0 0.0
        %348 = vmatpush.msra.mxu0 0.0
        %349 = vmatpush.msra.mxu0 0.0
        %350 = vmatpush.msra.mxu0 0.0
        %351 = vmatpush.msra.mxu0 0.0
        %352 = vmatpush.msra.mxu0 0.0
        %353 = vmatpush.msra.mxu0 %v271
        %354 = vmatpush.msra.mxu0 %v268
        %355 = vmatpush.msra.mxu0 %v265
        %356 = vmatpush.msra.mxu0 %v262
        %357 = vmatmul.f32.gmra.mxu0 %v318
        %v358 = vpop.f32.mrf.mxu0
        %v359 = vadd.f32 0.0, %v358
        %360 = vmatmul.f32.gmra.mxu0 %v321
        %v361 = vpop.f32.mrf.mxu0
        %v362 = vadd.f32 0.0, %v361
        %363 = vmatmul.f32.gmra.mxu0 %v324
        %v364 = vpop.f32.mrf.mxu0
        %v365 = vadd.f32 0.0, %v364
        %366 = vmatmul.f32.gmra.mxu0 %v327
        %v367 = vpop.f32.mrf.mxu0
        %v368 = vadd.f32 0.0, %v367
        %369 = vmatmul.f32.gmra.mxu0 %v330
        %v370 = vpop.f32.mrf.mxu0
        %v371 = vadd.f32 0.0, %v370
        %372 = vmatmul.f32.gmra.mxu0 %v333
        %v373 = vpop.f32.mrf.mxu0
        %v374 = vadd.f32 0.0, %v373
        %375 = vmatmul.f32.gmra.mxu0 %v336
        %v376 = vpop.f32.mrf.mxu0
        %v377 = vadd.f32 0.0, %v376
        %378 = vmatmul.f32.gmra.mxu0 %v339
        %v379 = vpop.f32.mrf.mxu0
        %v380 = vadd.f32 0.0, %v379
        %381 = vdwg.mxu0
        %382 = vmatpush.msra.mxu0 0.0
        %383 = vmatpush.msra.mxu0 0.0
        %384 = vmatpush.msra.mxu0 0.0
        %385 = vmatpush.msra.mxu0 0.0
        %386 = vmatpush.msra.mxu0 0.0
        %387 = vmatpush.msra.mxu0 0.0
        %388 = vmatpush.msra.mxu0 0.0
        %389 = vmatpush.msra.mxu0 0.0
        %390 = vmatpush.msra.mxu0 0.0
        %391 = vmatpush.msra.mxu0 0.0
        %392 = vmatpush.msra.mxu0 0.0
        %393 = vmatpush.msra.mxu0 0.0
        %394 = vmatpush.msra.mxu0 %v283
        %395 = vmatpush.msra.mxu0 %v280
        %396 = vmatpush.msra.mxu0 %v277
        %397 = vmatpush.msra.mxu0 %v274
        %398 = vmatmul.f32.gmra.mxu0 %v318
        %v399 = vpop.f32.mrf.mxu0
        %v400 = vadd.f32 0.0, %v399
        %401 = vmatmul.f32.gmra.mxu0 %v321
        %v402 = vpop.f32.mrf.mxu0
        %v403 = vadd.f32 0.0, %v402
        %404 = vmatmul.f32.gmra.mxu0 %v324
        %v405 = vpop.f32.mrf.mxu0
        %v406 = vadd.f32 0.0, %v405
        %407 = vmatmul.f32.gmra.mxu0 %v327
        %v408 = vpop.f32.mrf.mxu0
        %v409 = vadd.f32 0.0, %v408
        %410 = vmatmul.f32.gmra.mxu0 %v330
        %v411 = vpop.f32.mrf.mxu0
        %v412 = vadd.f32 0.0, %v411
        %413 = vmatmul.f32.gmra.mxu0 %v333
        %v414 = vpop.f32.mrf.mxu0
        %v415 = vadd.f32 0.0, %v414
        %416 = vmatmul.f32.gmra.mxu0 %v336
        %v417 = vpop.f32.mrf.mxu0
        %v418 = vadd.f32 0.0, %v417
        %419 = vmatmul.f32.gmra.mxu0 %v339
        %v420 = vpop.f32.mrf.mxu0
        %v421 = vadd.f32 0.0, %v420
        %422 = vdwg.mxu0
        %423 = vmatpush.msra.mxu0 0.0
        %424 = vmatpush.msra.mxu0 0.0
        %425 = vmatpush.msra.mxu0 0.0
        %426 = vmatpush.msra.mxu0 0.0
        %427 = vmatpush.msra.mxu0 0.0
        %428 = vmatpush.msra.mxu0 0.0
        %429 = vmatpush.msra.mxu0 0.0
        %430 = vmatpush.msra.mxu0 0.0
        %431 = vmatpush.msra.mxu0 0.0
        %432 = vmatpush.msra.mxu0 0.0
        %433 = vmatpush.msra.mxu0 0.0
        %434 = vmatpush.msra.mxu0 0.0
        %435 = vmatpush.msra.mxu0 %v295
        %436 = vmatpush.msra.mxu0 %v292
        %437 = vmatpush.msra.mxu0 %v289
        %438 = vmatpush.msra.mxu0 %v286
        %439 = vmatmul.f32.gmra.mxu0 %v318
        %v440 = vpop.f32.mrf.mxu0
        %v441 = vadd.f32 0.0, %v440
        %442 = vmatmul.f32.gmra.mxu0 %v321
        %v443 = vpop.f32.mrf.mxu0
        %v444 = vadd.f32 0.0, %v443
        %445 = vmatmul.f32.gmra.mxu0 %v324
        %v446 = vpop.f32.mrf.mxu0
        %v447 = vadd.f32 0.0, %v446
        %448 = vmatmul.f32.gmra.mxu0 %v327
        %v449 = vpop.f32.mrf.mxu0
        %v450 = vadd.f32 0.0, %v449
        %451 = vmatmul.f32.gmra.mxu0 %v330
        %v452 = vpop.f32.mrf.mxu0
        %v453 = vadd.f32 0.0, %v452
        %454 = vmatmul.f32.gmra.mxu0 %v333
        %v455 = vpop.f32.mrf.mxu0
        %v456 = vadd.f32 0.0, %v455
        %457 = vmatmul.f32.gmra.mxu0 %v336
        %v458 = vpop.f32.mrf.mxu0
        %v459 = vadd.f32 0.0, %v458
        %460 = vmatmul.f32.gmra.mxu0 %v339
        %v461 = vpop.f32.mrf.mxu0
        %v462 = vadd.f32 0.0, %v461
        %463 = vdwg.mxu0
        %464 = vmatpush.msra.mxu0 0.0
        %465 = vmatpush.msra.mxu0 0.0
        %466 = vmatpush.msra.mxu0 0.0
        %467 = vmatpush.msra.mxu0 0.0
        %468 = vmatpush.msra.mxu0 0.0
        %469 = vmatpush.msra.mxu0 0.0
        %470 = vmatpush.msra.mxu0 0.0
        %471 = vmatpush.msra.mxu0 0.0
        %472 = vmatpush.msra.mxu0 0.0
        %473 = vmatpush.msra.mxu0 0.0
        %474 = vmatpush.msra.mxu0 0.0
        %475 = vmatpush.msra.mxu0 0.0
        %476 = vmatpush.msra.mxu0 %v307
        %477 = vmatpush.msra.mxu0 %v304
        %478 = vmatpush.msra.mxu0 %v301
        %479 = vmatpush.msra.mxu0 %v298
        %480 = vmatmul.f32.gmra.mxu0 %v318
        %v481 = vpop.f32.mrf.mxu0
        %v482 = vadd.f32 0.0, %v481
        %483 = vmatmul.f32.gmra.mxu0 %v321
        %v484 = vpop.f32.mrf.mxu0
        %v485 = vadd.f32 0.0, %v484
        %486 = vmatmul.f32.gmra.mxu0 %v324
        %v487 = vpop.f32.mrf.mxu0
        %v488 = vadd.f32 0.0, %v487
        %489 = vmatmul.f32.gmra.mxu0 %v327
        %v490 = vpop.f32.mrf.mxu0
        %v491 = vadd.f32 0.0, %v490
        %492 = vmatmul.f32.gmra.mxu0 %v330
        %v493 = vpop.f32.mrf.mxu0
        %v494 = vadd.f32 0.0, %v493
        %495 = vmatmul.f32.gmra.mxu0 %v333
        %v496 = vpop.f32.mrf.mxu0
        %v497 = vadd.f32 0.0, %v496
        %498 = vmatmul.f32.gmra.mxu0 %v336
        %v499 = vpop.f32.mrf.mxu0
        %v500 = vadd.f32 0.0, %v499
        %501 = vmatmul.f32.gmra.mxu0 %v339
        %v502 = vpop.f32.mrf.mxu0
        %v503 = vadd.f32 0.0, %v502
        %504 = vdwg.mxu0
        %vm505 = vcmask 523264
        %506 = vst.msk [vmem:[%s166] sm:$0xff] %vm505, %v359
        %507 = vst.msk [vmem:[%s166 + $0x8] sm:$0xff] %vm505, %v362
        %508 = vst.msk [vmem:[%s166 + $0x10] sm:$0xff] %vm505, %v365
        %509 = vst.msk [vmem:[%s166 + $0x18] sm:$0xff] %vm505, %v368
        %510 = vst.msk [vmem:[%s166 + $0x20] sm:$0xff] %vm505, %v371
        %511 = vst.msk [vmem:[%s166 + $0x28] sm:$0xff] %vm505, %v374
        %512 = vst.msk [vmem:[%s166 + $0x30] sm:$0xff] %vm505, %v377
        %513 = vst.msk [vmem:[%s166 + $0x38] sm:$0xff] %vm505, %v380
        %514 = vst.msk [vmem:[%s166 + $0x40] sm:$0xff] %vm505, %v400
        %515 = vst.msk [vmem:[%s166 + $0x48] sm:$0xff] %vm505, %v403
        %516 = vst.msk [vmem:[%s166 + $0x50] sm:$0xff] %vm505, %v406
        %517 = vst.msk [vmem:[%s166 + $0x58] sm:$0xff] %vm505, %v409
        %518 = vst.msk [vmem:[%s166 + $0x60] sm:$0xff] %vm505, %v412
        %519 = vst.msk [vmem:[%s166 + $0x68] sm:$0xff] %vm505, %v415
        %520 = vst.msk [vmem:[%s166 + $0x70] sm:$0xff] %vm505, %v418
        %521 = vst.msk [vmem:[%s166 + $0x78] sm:$0xff] %vm505, %v421
        %522 = vst.msk [vmem:[%s166 + $0x80] sm:$0xff] %vm505, %v441
        %523 = vst.msk [vmem:[%s166 + $0x88] sm:$0xff] %vm505, %v444
        %524 = vst.msk [vmem:[%s166 + $0x90] sm:$0xff] %vm505, %v447
        %525 = vst.msk [vmem:[%s166 + $0x98] sm:$0xff] %vm505, %v450
        %526 = vst.msk [vmem:[%s166 + $0xa0] sm:$0xff] %vm505, %v453
        %527 = vst.msk [vmem:[%s166 + $0xa8] sm:$0xff] %vm505, %v456
        %528 = vst.msk [vmem:[%s166 + $0xb0] sm:$0xff] %vm505, %v459
        %529 = vst.msk [vmem:[%s166 + $0xb8] sm:$0xff] %vm505, %v462
        %530 = vst.msk [vmem:[%s166 + $0xc0] sm:$0xff] %vm505, %v482
        %531 = vst.msk [vmem:[%s166 + $0xc8] sm:$0xff] %vm505, %v485
        %532 = vst.msk [vmem:[%s166 + $0xd0] sm:$0xff] %vm505, %v488
        %533 = vst.msk [vmem:[%s166 + $0xd8] sm:$0xff] %vm505, %v491
        %534 = vst.msk [vmem:[%s166 + $0xe0] sm:$0xff] %vm505, %v494
        %535 = vst.msk [vmem:[%s166 + $0xe8] sm:$0xff] %vm505, %v497
        %536 = vst.msk [vmem:[%s166 + $0xf0] sm:$0xff] %vm505, %v500
        %537 = vst.msk [vmem:[%s166 + $0xf8] sm:$0xff] %vm505, %v503
        %s538 = sand.u32 %s93, 1
        %s539 = scalar_lea.sflag [#allocation3], %s538
        %s540 = sand.u32 %s93, 1
        %s541 = smul.addr %s540, 256
        %s542 = scalar_lea.vmem [#allocation2], %s541
        // Predicated region
        $region33: #{up_forward.7} parent=31 // pred_check
          %p543 = pneg %p103
        $region34: #{up_forward.7} parent=31 // pred_check_branch
          %545 = sbr.rel (%p543) target = $region36
        $region35: #{up_forward.7} parent=31 // pred_region
          %s546 = smul.u32 4, %s17
          %548 = vsyncadd %s539, 0
          %s549 = smul.addr %s546, 8
          %s550 = smul.addr %s549, 8
          %s551 = scalar_lea.hbm %s3, %s550
          %s552 = sshll.u32 %s542, 4
          %s553 = int_to_ptr.vmem [resolvable:$true] %s552
          %s554 = sshll.u32 %s551, 4
          %s555 = int_to_ptr.hbm [resolvable:$true] %s554
          %560 = dma.vmem_to_hbm [thread:$0]  %s553, 4096, %s555, %s539, 128, 128, 8
        $region36: #{up_forward.7} parent=31 // pred_fallthru
          _
      $region32: #{up_forward.7} parent=5 // pred_fallthru
        _
      %p561 = scmp.le.s32.totalorder 2, %s12
      // Predicated region
      $region37: #{up_forward.7} parent=5 // pred_check
        %p562 = pneg %p561
      $region38: #{up_forward.7} parent=5 // pred_check_branch
        %564 = sbr.rel (%p562) target = $region40
      $region39: #{up_forward.7} parent=5 // pred_region
        %s565 = ssub.s32 %s12, 2
        // Predicated region
        $region41: #{up_forward.7} parent=39 // pred_check
          %p566 = pneg %p109
        $region42: #{up_forward.7} parent=39 // pred_check_branch
          %568 = sbr.rel (%p566) target = $region44
        $region43: #{up_forward.7} parent=39 // pred_region
          %s569 = sand.u32 %s94, 1
          %s570 = scalar_lea.sflag [#allocation3], %s569
          %s571 = sand.u32 %s94, 1
          %s572 = smul.addr %s571, 256
          %s573 = scalar_lea.vmem [#allocation2], %s572
          %575 = dma.done %s570, 4096
        $region44: #{up_forward.7} parent=39 // pred_fallthru
          _
      $region40: #{up_forward.7} parent=5 // pred_fallthru
        _
    $region6: #{up_forward.7} parent=1 // loop_footer
      %s16 = sadd.s32 1, %s12
    $region7: #{up_forward.7} parent=1 // loop_footer_branch
      %11 = sbr.rel target = $region3
    $region8: #{up_forward.7} parent=1 // loop_exit
      _
    %576 = vsyncpa [#allocation3], 1
    %s577 = scalar_lea.sflag [#allocation3], 1
    %578 = vsyncpa %s577, 1

</llo_original>
